<compile_context>
chip_gen: v7x
topology: tpu7x:2x2x1
jax: 0.10.0
libtpu: 0.0.40
codegen_flags: <defaults>
</compile_context>

<pallas_src>
import functools

import jax
import jax.numpy as jnp
from jax.experimental import pallas as pl
from jax.experimental.pallas import tpu as pltpu


def _loss_kernel(f2_ref, pred_ref, mask_ref, confi_ref,
                 bce_ref, inter_ref, union_ref, pooled_ref,
                 *, bt, h, w):
    pred = pred_ref[...]    # (bt, h, w) f32
    mask = mask_ref[...]    # (bt, h, w) f32
    confi = confi_ref[...]  # (bt, h, w) f32
    f2 = f2_ref[0]          # scalar from SMEM

    # ---- 31x31 box filter as two band-matrix matmuls (bf16 operands, f32 acc) ----
    ih = jax.lax.broadcasted_iota(jnp.int32, (h, h), 0)
    jh = jax.lax.broadcasted_iota(jnp.int32, (h, h), 1)
    bh = jnp.where(jnp.abs(ih - jh) <= 15, 1.0, 0.0).astype(jnp.bfloat16)
    iw = jax.lax.broadcasted_iota(jnp.int32, (w, w), 0)
    jw = jax.lax.broadcasted_iota(jnp.int32, (w, w), 1)
    bw = jnp.where(jnp.abs(iw - jw) <= 15, 1.0, 0.0).astype(jnp.bfloat16)

    # right matmul folded over the whole block: (bt*h, w) @ (w, w)
    y = jnp.dot(mask.astype(jnp.bfloat16).reshape(bt * h, w), bw,
                preferred_element_type=jnp.float32)
    y = y.astype(jnp.bfloat16).reshape(bt, h, w)   # row sums <= 31, exact in bf16

    # left matmul per image (band matrix shared across the batch)
    for i in range(bt):
        pooled_ref[i] = jnp.dot(bh, y[i], preferred_element_type=jnp.float32)

    pooled = pooled_ref[...] * jnp.float32(1.0 / (31.0 * 31.0))

    # ---- elementwise phase ----
    # weit = 1 + f1*|avgpool(mask) - mask| + f2*confi   (f1 == 1)
    weit = 1.0 + jnp.abs(pooled - mask) + f2 * confi

    e = jnp.exp(-jnp.abs(pred))                             # single exp, reused
    bce = jnp.maximum(pred, 0.0) - pred * mask + jnp.log(1.0 + e)
    r = 1.0 / (1.0 + e)
    sig = jnp.where(pred >= 0.0, r, e * r)                  # exact sigmoid from e

    inter_c = sig * mask * weit
    union_c = (sig + mask) * weit

    def per_image_sum(x):                                   # (bt, h, w) -> (bt, 1)
        return jnp.sum(jnp.sum(x, axis=2), axis=1, keepdims=True)

    bce_ref[...] = jnp.broadcast_to(per_image_sum(bce), (bt, 128))
    inter_ref[...] = jnp.broadcast_to(per_image_sum(inter_c), (bt, 128))
    union_ref[...] = jnp.broadcast_to(per_image_sum(union_c), (bt, 128))


def _choose_block(b, h, w):
    rup8 = lambda x: ((x + 7) // 8) * 8
    bt = rup8(max(1, pl.cdiv(256, h)))          # fill the MXU M dimension
    bt = min(bt, rup8(b))                       # never exceed the (padded) batch
    per_img = 13 * h * w * 4                    # dbl-buffered inputs + scratch + temps
    bt = min(bt, max(8, (40 * (2 ** 20) // per_img) // 8 * 8))   # VMEM budget (v7x-safe)
    return max(8, min(bt, 64))


@jax.jit
def uncertainty_aware_structure_loss(pred, mask, confi_map, epoch):
    n, c, h, w = pred.shape
    b = n * c
    bt = _choose_block(b, h, w)
    nblk = pl.cdiv(b, bt)
    b_pad = nblk * bt

    def prep(x):
        x = x.reshape(b, h, w).astype(jnp.float32)
        if b_pad != b:
            x = jnp.pad(x, ((0, b_pad - b), (0, 0), (0, 0)))
        return x

    pred3, mask3, confi3 = prep(pred), prep(mask), prep(confi_map)

    # epoch < 20 -> f2 = 0 else f2 = 10
    f2 = jnp.where(jnp.asarray(epoch) < 20, 0.0, 10.0).astype(jnp.float32).reshape(1)

    kernel = functools.partial(_loss_kernel, bt=bt, h=h, w=w)
    vmem_need = 13 * bt * h * w * 4 + 8 * (h * h + w * w)
    vmem_limit = int(min(100 * (2 ** 20), max(32 * (2 ** 20), vmem_need)))

    out_sds = jax.ShapeDtypeStruct((b_pad, 128), jnp.float32)
    bce_p, inter_p, union_p = pl.pallas_call(
        kernel,
        out_shape=(out_sds, out_sds, out_sds),
        grid_spec=pltpu.PrefetchScalarGridSpec(
            num_scalar_prefetch=0,
            grid=(nblk,),
            in_specs=[
                pl.BlockSpec(memory_space=pltpu.MemorySpace.SMEM),     # f2 scalar
                pl.BlockSpec((bt, h, w), lambda i: (i, 0, 0)),         # pred
                pl.BlockSpec((bt, h, w), lambda i: (i, 0, 0)),         # mask
                pl.BlockSpec((bt, h, w), lambda i: (i, 0, 0)),         # confi
            ],
            out_specs=[
                pl.BlockSpec((bt, 128), lambda i: (i, 0)),             # bce partial
                pl.BlockSpec((bt, 128), lambda i: (i, 0)),             # inter
                pl.BlockSpec((bt, 128), lambda i: (i, 0)),             # union
            ],
            scratch_shapes=[pltpu.VMEM((bt, h, w), jnp.float32)],      # pooled
        ),
        compiler_params=pltpu.CompilerParams(
            dimension_semantics=("parallel",),
            vmem_limit_bytes=vmem_limit),
    )(f2, pred3, mask3, confi3)

    # tiny final reduction in plain JAX (ignore padded images)
    bce_sum = jnp.sum(bce_p[:b, 0])
    inter = inter_p[:b, 0]
    union = union_p[:b, 0]
    # reduce='none' legacy path -> reduction='mean' -> global scalar wbce
    wbce = bce_sum / jnp.float32(b * h * w)
    wiou = 1.0 - (inter + 1.0) / (union - inter + 1.0)     # epsilon == 1
    return wbce + jnp.mean(wiou)


def _ref_loss(pred, mask, confi, epoch):
    """Pure-JAX reference replicating the exact PyTorch behavior."""
    f2 = 0.0 if epoch < 20 else 10.0
    summed = jax.lax.reduce_window(
        mask, 0.0, jax.lax.add,
        window_dimensions=(1, 1, 31, 31),
        window_strides=(1, 1, 1, 1),
        padding=((0, 0), (0, 0), (15, 15), (15, 15)))
    avg = summed / (31.0 * 31.0)
    weit = 1.0 + jnp.abs(avg - mask) + f2 * confi
    bce = (jnp.maximum(pred, 0.0) - pred * mask
           + jnp.log1p(jnp.exp(-jnp.abs(pred))))
    wbce = jnp.mean(bce)                      # reduce='none' -> 'mean' (legacy path)
    sig = jax.nn.sigmoid(pred)
    inter = jnp.sum(sig * mask * weit, axis=(2, 3))
    union = jnp.sum((sig + mask) * weit, axis=(2, 3))
    wiou = 1.0 - (inter + 1.0) / (union - inter + 1.0)
    return jnp.mean(wbce + wiou)


if __name__ == "__main__":
    key = jax.random.PRNGKey(0)
    k1, k2, k3 = jax.random.split(key, 3)
    N, C, H, W = 2, 1, 16, 16

    pred = jax.random.normal(k1, (N, C, H, W), dtype=jnp.float32)
    mask = (jax.random.uniform(k2, (N, C, H, W)) > 0.5).astype(jnp.float32)
    confi = jax.random.uniform(k3, (N, C, H, W), dtype=jnp.float32)

    for epoch in (5, 25):
        loss = uncertainty_aware_structure_loss(pred, mask, confi, epoch)
        loss = jax.block_until_ready(loss)
        ref = _ref_loss(pred, mask, confi, epoch)
        assert jnp.allclose(loss, ref, rtol=1e-4, atol=1e-5), (loss, ref)

    print("KERNEL_OK")
</pallas_src>

<mosaic_0001>
module attributes {stable_mosaic.version = 11 : i64} {
  func.func @_loss_kernel(%arg0: i32, %arg1: memref<1xf32, #tpu.memory_space<smem>>, %arg2: memref<8x16x16xf32, #tpu.memory_space<vmem>>, %arg3: memref<8x16x16xf32, #tpu.memory_space<vmem>>, %arg4: memref<8x16x16xf32, #tpu.memory_space<vmem>>, %arg5: memref<8x128xf32, #tpu.memory_space<vmem>>, %arg6: memref<8x128xf32, #tpu.memory_space<vmem>>, %arg7: memref<8x128xf32, #tpu.memory_space<vmem>>, %arg8: memref<8x16x16xf32, #tpu.memory_space<vmem>>) attributes {dimension_semantics = [#tpu.dimension_semantics<parallel>], iteration_bounds = array<i64: 1>, scalar_prefetch = 0 : i64, scratch_operands = 1 : i64, tpu.core_type = #tpu.core_type<tc>, window_params = [{transform_indices = @transform_0, window_bounds = array<i64: 1>}, {transform_indices = @transform_1, window_bounds = array<i64: 8, 16, 16>}, {transform_indices = @transform_2, window_bounds = array<i64: 8, 16, 16>}, {transform_indices = @transform_3, window_bounds = array<i64: 8, 16, 16>}, {transform_indices = @transform_4, window_bounds = array<i64: 8, 128>}, {transform_indices = @transform_5, window_bounds = array<i64: 8, 128>}, {transform_indices = @transform_6, window_bounds = array<i64: 8, 128>}]} {
    %c0 = arith.constant 0 : index
    %c0_0 = arith.constant 0 : index
    %c0_1 = arith.constant 0 : index
    %0 = vector.load %arg2[%c0, %c0_0, %c0_1] : memref<8x16x16xf32, #tpu.memory_space<vmem>>, vector<8x16x16xf32>
    %c0_2 = arith.constant 0 : index
    %c0_3 = arith.constant 0 : index
    %c0_4 = arith.constant 0 : index
    %1 = vector.load %arg3[%c0_2, %c0_3, %c0_4] : memref<8x16x16xf32, #tpu.memory_space<vmem>>, vector<8x16x16xf32>
    %c0_5 = arith.constant 0 : index
    %c0_6 = arith.constant 0 : index
    %c0_7 = arith.constant 0 : index
    %2 = vector.load %arg4[%c0_5, %c0_6, %c0_7] : memref<8x16x16xf32, #tpu.memory_space<vmem>>, vector<8x16x16xf32>
    %c0_8 = arith.constant 0 : index
    %3 = memref.load %arg1[%c0_8] : memref<1xf32, #tpu.memory_space<smem>>
    %4 = tpu.iota {dimensions = array<i32: 0>} : vector<16x16xi32>
    %5 = tpu.iota {dimensions = array<i32: 1>} : vector<16x16xi32>
    %6 = arith.subi %4, %5 : vector<16x16xi32>
    %7 = math.absi %6 : vector<16x16xi32>
    %c15_i32 = arith.constant 15 : i32
    %8 = vector.broadcast %c15_i32 : i32 to vector<16x16xi32>
    %9 = arith.cmpi sle, %7, %8 : vector<16x16xi32>
    %cst = arith.constant 1.000000e+00 : f32
    %cst_9 = arith.constant 0.000000e+00 : f32
    %10 = vector.broadcast %cst : f32 to vector<16x16xf32>
    %11 = vector.broadcast %cst_9 : f32 to vector<16x16xf32>
    %12 = arith.select %9, %10, %11 : vector<16x16xi1>, vector<16x16xf32>
    %13 = arith.truncf %12 : vector<16x16xf32> to vector<16x16xbf16>
    %14 = tpu.iota {dimensions = array<i32: 0>} : vector<16x16xi32>
    %15 = tpu.iota {dimensions = array<i32: 1>} : vector<16x16xi32>
    %16 = arith.subi %14, %15 : vector<16x16xi32>
    %17 = math.absi %16 : vector<16x16xi32>
    %c15_i32_10 = arith.constant 15 : i32
    %18 = vector.broadcast %c15_i32_10 : i32 to vector<16x16xi32>
    %19 = arith.cmpi sle, %17, %18 : vector<16x16xi32>
    %cst_11 = arith.constant 1.000000e+00 : f32
    %cst_12 = arith.constant 0.000000e+00 : f32
    %20 = vector.broadcast %cst_11 : f32 to vector<16x16xf32>
    %21 = vector.broadcast %cst_12 : f32 to vector<16x16xf32>
    %22 = arith.select %19, %20, %21 : vector<16x16xi1>, vector<16x16xf32>
    %23 = arith.truncf %22 : vector<16x16xf32> to vector<16x16xbf16>
    %24 = arith.truncf %1 : vector<8x16x16xf32> to vector<8x16x16xbf16>
    %25 = vector.shape_cast %24 : vector<8x16x16xbf16> to vector<128x16xbf16>
    %cst_13 = arith.constant dense<0.000000e+00> : vector<128x16xf32>
    %26 = tpu.matmul %25, %23, %cst_13 {dimension_numbers = #tpu.dot_dimension_numbers<[1], [0], [0], [1], [0, 0, 1, 1], [], []>} : vector<128x16xbf16>, vector<16x16xbf16>, vector<128x16xf32> -> vector<128x16xf32>
    %27 = arith.truncf %26 : vector<128x16xf32> to vector<128x16xbf16>
    %28 = vector.shape_cast %27 : vector<128x16xbf16> to vector<8x16x16xbf16>
    %29 = vector.extract_strided_slice %28 {offsets = [0, 0, 0], sizes = [1, 16, 16], strides = [1, 1, 1]} : vector<8x16x16xbf16> to vector<1x16x16xbf16>
    %30 = vector.shape_cast %29 : vector<1x16x16xbf16> to vector<16x16xbf16>
    %cst_14 = arith.constant dense<0.000000e+00> : vector<16x16xf32>
    %31 = tpu.matmul %13, %30, %cst_14 {dimension_numbers = #tpu.dot_dimension_numbers<[1], [0], [0], [1], [0, 0, 1, 1], [], []>} : vector<16x16xbf16>, vector<16x16xbf16>, vector<16x16xf32> -> vector<16x16xf32>
    %c0_15 = arith.constant 0 : index
    %c0_16 = arith.constant 0 : index
    %c0_17 = arith.constant 0 : index
    %32 = vector.load %arg8[%c0_15, %c0_16, %c0_17] : memref<8x16x16xf32, #tpu.memory_space<vmem>>, vector<1x16x16xf32>
    %33 = vector.shape_cast %32 : vector<1x16x16xf32> to vector<16x16xf32>
    %34 = vector.shape_cast %31 : vector<16x16xf32> to vector<1x16x16xf32>
    tpu.vector_store %arg8[%c0_15, %c0_16, %c0_17], %34 {strides = array<i32>} : memref<8x16x16xf32, #tpu.memory_space<vmem>>, vector<1x16x16xf32>,
    %35 = vector.extract_strided_slice %28 {offsets = [1, 0, 0], sizes = [1, 16, 16], strides = [1, 1, 1]} : vector<8x16x16xbf16> to vector<1x16x16xbf16>
    %36 = vector.shape_cast %35 : vector<1x16x16xbf16> to vector<16x16xbf16>
    %cst_18 = arith.constant dense<0.000000e+00> : vector<16x16xf32>
    %37 = tpu.matmul %13, %36, %cst_18 {dimension_numbers = #tpu.dot_dimension_numbers<[1], [0], [0], [1], [0, 0, 1, 1], [], []>} : vector<16x16xbf16>, vector<16x16xbf16>, vector<16x16xf32> -> vector<16x16xf32>
    %c1 = arith.constant 1 : index
    %c0_19 = arith.constant 0 : index
    %c0_20 = arith.constant 0 : index
    %38 = vector.load %arg8[%c1, %c0_19, %c0_20] : memref<8x16x16xf32, #tpu.memory_space<vmem>>, vector<1x16x16xf32>
    %39 = vector.shape_cast %38 : vector<1x16x16xf32> to vector<16x16xf32>
    %40 = vector.shape_cast %37 : vector<16x16xf32> to vector<1x16x16xf32>
    tpu.vector_store %arg8[%c1, %c0_19, %c0_20], %40 {strides = array<i32>} : memref<8x16x16xf32, #tpu.memory_space<vmem>>, vector<1x16x16xf32>,
    %41 = vector.extract_strided_slice %28 {offsets = [2, 0, 0], sizes = [1, 16, 16], strides = [1, 1, 1]} : vector<8x16x16xbf16> to vector<1x16x16xbf16>
    %42 = vector.shape_cast %41 : vector<1x16x16xbf16> to vector<16x16xbf16>
    %cst_21 = arith.constant dense<0.000000e+00> : vector<16x16xf32>
    %43 = tpu.matmul %13, %42, %cst_21 {dimension_numbers = #tpu.dot_dimension_numbers<[1], [0], [0], [1], [0, 0, 1, 1], [], []>} : vector<16x16xbf16>, vector<16x16xbf16>, vector<16x16xf32> -> vector<16x16xf32>
    %c2 = arith.constant 2 : index
    %c0_22 = arith.constant 0 : index
    %c0_23 = arith.constant 0 : index
    %44 = vector.load %arg8[%c2, %c0_22, %c0_23] : memref<8x16x16xf32, #tpu.memory_space<vmem>>, vector<1x16x16xf32>
    %45 = vector.shape_cast %44 : vector<1x16x16xf32> to vector<16x16xf32>
    %46 = vector.shape_cast %43 : vector<16x16xf32> to vector<1x16x16xf32>
    tpu.vector_store %arg8[%c2, %c0_22, %c0_23], %46 {strides = array<i32>} : memref<8x16x16xf32, #tpu.memory_space<vmem>>, vector<1x16x16xf32>,
    %47 = vector.extract_strided_slice %28 {offsets = [3, 0, 0], sizes = [1, 16, 16], strides = [1, 1, 1]} : vector<8x16x16xbf16> to vector<1x16x16xbf16>
    %48 = vector.shape_cast %47 : vector<1x16x16xbf16> to vector<16x16xbf16>
    %cst_24 = arith.constant dense<0.000000e+00> : vector<16x16xf32>
    %49 = tpu.matmul %13, %48, %cst_24 {dimension_numbers = #tpu.dot_dimension_numbers<[1], [0], [0], [1], [0, 0, 1, 1], [], []>} : vector<16x16xbf16>, vector<16x16xbf16>, vector<16x16xf32> -> vector<16x16xf32>
    %c3 = arith.constant 3 : index
    %c0_25 = arith.constant 0 : index
    %c0_26 = arith.constant 0 : index
    %50 = vector.load %arg8[%c3, %c0_25, %c0_26] : memref<8x16x16xf32, #tpu.memory_space<vmem>>, vector<1x16x16xf32>
    %51 = vector.shape_cast %50 : vector<1x16x16xf32> to vector<16x16xf32>
    %52 = vector.shape_cast %49 : vector<16x16xf32> to vector<1x16x16xf32>
    tpu.vector_store %arg8[%c3, %c0_25, %c0_26], %52 {strides = array<i32>} : memref<8x16x16xf32, #tpu.memory_space<vmem>>, vector<1x16x16xf32>,
    %53 = vector.extract_strided_slice %28 {offsets = [4, 0, 0], sizes = [1, 16, 16], strides = [1, 1, 1]} : vector<8x16x16xbf16> to vector<1x16x16xbf16>
    %54 = vector.shape_cast %53 : vector<1x16x16xbf16> to vector<16x16xbf16>
    %cst_27 = arith.constant dense<0.000000e+00> : vector<16x16xf32>
    %55 = tpu.matmul %13, %54, %cst_27 {dimension_numbers = #tpu.dot_dimension_numbers<[1], [0], [0], [1], [0, 0, 1, 1], [], []>} : vector<16x16xbf16>, vector<16x16xbf16>, vector<16x16xf32> -> vector<16x16xf32>
    %c4 = arith.constant 4 : index
    %c0_28 = arith.constant 0 : index
    %c0_29 = arith.constant 0 : index
    %56 = vector.load %arg8[%c4, %c0_28, %c0_29] : memref<8x16x16xf32, #tpu.memory_space<vmem>>, vector<1x16x16xf32>
    %57 = vector.shape_cast %56 : vector<1x16x16xf32> to vector<16x16xf32>
    %58 = vector.shape_cast %55 : vector<16x16xf32> to vector<1x16x16xf32>
    tpu.vector_store %arg8[%c4, %c0_28, %c0_29], %58 {strides = array<i32>} : memref<8x16x16xf32, #tpu.memory_space<vmem>>, vector<1x16x16xf32>,
    %59 = vector.extract_strided_slice %28 {offsets = [5, 0, 0], sizes = [1, 16, 16], strides = [1, 1, 1]} : vector<8x16x16xbf16> to vector<1x16x16xbf16>
    %60 = vector.shape_cast %59 : vector<1x16x16xbf16> to vector<16x16xbf16>
    %cst_30 = arith.constant dense<0.000000e+00> : vector<16x16xf32>
    %61 = tpu.matmul %13, %60, %cst_30 {dimension_numbers = #tpu.dot_dimension_numbers<[1], [0], [0], [1], [0, 0, 1, 1], [], []>} : vector<16x16xbf16>, vector<16x16xbf16>, vector<16x16xf32> -> vector<16x16xf32>
    %c5 = arith.constant 5 : index
    %c0_31 = arith.constant 0 : index
    %c0_32 = arith.constant 0 : index
    %62 = vector.load %arg8[%c5, %c0_31, %c0_32] : memref<8x16x16xf32, #tpu.memory_space<vmem>>, vector<1x16x16xf32>
    %63 = vector.shape_cast %62 : vector<1x16x16xf32> to vector<16x16xf32>
    %64 = vector.shape_cast %61 : vector<16x16xf32> to vector<1x16x16xf32>
    tpu.vector_store %arg8[%c5, %c0_31, %c0_32], %64 {strides = array<i32>} : memref<8x16x16xf32, #tpu.memory_space<vmem>>, vector<1x16x16xf32>,
    %65 = vector.extract_strided_slice %28 {offsets = [6, 0, 0], sizes = [1, 16, 16], strides = [1, 1, 1]} : vector<8x16x16xbf16> to vector<1x16x16xbf16>
    %66 = vector.shape_cast %65 : vector<1x16x16xbf16> to vector<16x16xbf16>
    %cst_33 = arith.constant dense<0.000000e+00> : vector<16x16xf32>
    %67 = tpu.matmul %13, %66, %cst_33 {dimension_numbers = #tpu.dot_dimension_numbers<[1], [0], [0], [1], [0, 0, 1, 1], [], []>} : vector<16x16xbf16>, vector<16x16xbf16>, vector<16x16xf32> -> vector<16x16xf32>
    %c6 = arith.constant 6 : index
    %c0_34 = arith.constant 0 : index
    %c0_35 = arith.constant 0 : index
    %68 = vector.load %arg8[%c6, %c0_34, %c0_35] : memref<8x16x16xf32, #tpu.memory_space<vmem>>, vector<1x16x16xf32>
    %69 = vector.shape_cast %68 : vector<1x16x16xf32> to vector<16x16xf32>
    %70 = vector.shape_cast %67 : vector<16x16xf32> to vector<1x16x16xf32>
    tpu.vector_store %arg8[%c6, %c0_34, %c0_35], %70 {strides = array<i32>} : memref<8x16x16xf32, #tpu.memory_space<vmem>>, vector<1x16x16xf32>,
    %71 = vector.extract_strided_slice %28 {offsets = [7, 0, 0], sizes = [1, 16, 16], strides = [1, 1, 1]} : vector<8x16x16xbf16> to vector<1x16x16xbf16>
    %72 = vector.shape_cast %71 : vector<1x16x16xbf16> to vector<16x16xbf16>
    %cst_36 = arith.constant dense<0.000000e+00> : vector<16x16xf32>
    %73 = tpu.matmul %13, %72, %cst_36 {dimension_numbers = #tpu.dot_dimension_numbers<[1], [0], [0], [1], [0, 0, 1, 1], [], []>} : vector<16x16xbf16>, vector<16x16xbf16>, vector<16x16xf32> -> vector<16x16xf32>
    %c7 = arith.constant 7 : index
    %c0_37 = arith.constant 0 : index
    %c0_38 = arith.constant 0 : index
    %74 = vector.load %arg8[%c7, %c0_37, %c0_38] : memref<8x16x16xf32, #tpu.memory_space<vmem>>, vector<1x16x16xf32>
    %75 = vector.shape_cast %74 : vector<1x16x16xf32> to vector<16x16xf32>
    %76 = vector.shape_cast %73 : vector<16x16xf32> to vector<1x16x16xf32>
    tpu.vector_store %arg8[%c7, %c0_37, %c0_38], %76 {strides = array<i32>} : memref<8x16x16xf32, #tpu.memory_space<vmem>>, vector<1x16x16xf32>,
    %c0_39 = arith.constant 0 : index
    %c0_40 = arith.constant 0 : index
    %c0_41 = arith.constant 0 : index
    %77 = vector.load %arg8[%c0_39, %c0_40, %c0_41] : memref<8x16x16xf32, #tpu.memory_space<vmem>>, vector<8x16x16xf32>
    %cst_42 = arith.constant 0.00104058278 : f32
    %78 = vector.broadcast %cst_42 : f32 to vector<8x16x16xf32>
    %79 = arith.mulf %77, %78 : vector<8x16x16xf32>
    %80 = arith.subf %79, %1 : vector<8x16x16xf32>
    %81 = math.absf %80 : vector<8x16x16xf32>
    %cst_43 = arith.constant 1.000000e+00 : f32
    %82 = vector.broadcast %cst_43 : f32 to vector<8x16x16xf32>
    %83 = arith.addf %82, %81 : vector<8x16x16xf32>
    %84 = vector.broadcast %3 : f32 to vector<8x16x16xf32>
    %85 = arith.mulf %84, %2 : vector<8x16x16xf32>
    %86 = arith.addf %83, %85 : vector<8x16x16xf32>
    %87 = math.absf %0 : vector<8x16x16xf32>
    %cst_44 = arith.constant 0.000000e+00 : f32
    %88 = vector.broadcast %cst_44 : f32 to vector<8x16x16xf32>
    %89 = arith.subf %88, %87 : vector<8x16x16xf32>
    %90 = math.exp %89 : vector<8x16x16xf32>
    %cst_45 = arith.constant 0.000000e+00 : f32
    %91 = vector.broadcast %cst_45 : f32 to vector<8x16x16xf32>
    %92 = arith.maximumf %0, %91 : vector<8x16x16xf32>
    %93 = arith.mulf %0, %1 : vector<8x16x16xf32>
    %94 = arith.subf %92, %93 : vector<8x16x16xf32>
    %cst_46 = arith.constant 1.000000e+00 : f32
    %95 = vector.broadcast %cst_46 : f32 to vector<8x16x16xf32>
    %96 = arith.addf %95, %90 : vector<8x16x16xf32>
    %97 = math.log %96 : vector<8x16x16xf32>
    %98 = arith.addf %94, %97 : vector<8x16x16xf32>
    %cst_47 = arith.constant 1.000000e+00 : f32
    %99 = vector.broadcast %cst_47 : f32 to vector<8x16x16xf32>
    %100 = arith.addf %99, %90 : vector<8x16x16xf32>
    %cst_48 = arith.constant 1.000000e+00 : f32
    %101 = vector.broadcast %cst_48 : f32 to vector<8x16x16xf32>
    %102 = arith.divf %101, %100 : vector<8x16x16xf32>
    %cst_49 = arith.constant 0.000000e+00 : f32
    %103 = vector.broadcast %cst_49 : f32 to vector<8x16x16xf32>
    %104 = arith.cmpf oge, %0, %103 : vector<8x16x16xf32>
    %105 = arith.mulf %90, %102 : vector<8x16x16xf32>
    %106 = arith.select %104, %102, %105 : vector<8x16x16xi1>, vector<8x16x16xf32>
    %107 = arith.mulf %106, %1 : vector<8x16x16xf32>
    %108 = arith.mulf %107, %86 : vector<8x16x16xf32>
    %109 = arith.addf %106, %1 : vector<8x16x16xf32>
    %110 = arith.mulf %109, %86 : vector<8x16x16xf32>
    %cst_50 = arith.constant dense<0.000000e+00> : vector<8x16xf32>
    %111 = vector.multi_reduction <add>, %98, %cst_50 [2] : vector<8x16x16xf32> to vector<8x16xf32>
    %cst_51 = arith.constant dense<0.000000e+00> : vector<8xf32>
    %112 = vector.multi_reduction <add>, %111, %cst_51 [1] : vector<8x16xf32> to vector<8xf32>
    %113 = vector.shape_cast %112 : vector<8xf32> to vector<8x1xf32>
    %114 = vector.shape_cast %113 : vector<8x1xf32> to vector<8x1xf32>
    %115 = vector.broadcast %114 : vector<8x1xf32> to vector<8x128xf32>
    %c0_52 = arith.constant 0 : index
    %c0_53 = arith.constant 0 : index
    %116 = vector.load %arg5[%c0_52, %c0_53] : memref<8x128xf32, #tpu.memory_space<vmem>>, vector<8x128xf32>
    tpu.vector_store %arg5[%c0_52, %c0_53], %115 {strides = array<i32>} : memref<8x128xf32, #tpu.memory_space<vmem>>, vector<8x128xf32>,
    %cst_54 = arith.constant dense<0.000000e+00> : vector<8x16xf32>
    %117 = vector.multi_reduction <add>, %108, %cst_54 [2] : vector<8x16x16xf32> to vector<8x16xf32>
    %cst_55 = arith.constant dense<0.000000e+00> : vector<8xf32>
    %118 = vector.multi_reduction <add>, %117, %cst_55 [1] : vector<8x16xf32> to vector<8xf32>
    %119 = vector.shape_cast %118 : vector<8xf32> to vector<8x1xf32>
    %120 = vector.shape_cast %119 : vector<8x1xf32> to vector<8x1xf32>
    %121 = vector.broadcast %120 : vector<8x1xf32> to vector<8x128xf32>
    %c0_56 = arith.constant 0 : index
    %c0_57 = arith.constant 0 : index
    %122 = vector.load %arg6[%c0_56, %c0_57] : memref<8x128xf32, #tpu.memory_space<vmem>>, vector<8x128xf32>
    tpu.vector_store %arg6[%c0_56, %c0_57], %121 {strides = array<i32>} : memref<8x128xf32, #tpu.memory_space<vmem>>, vector<8x128xf32>,
    %cst_58 = arith.constant dense<0.000000e+00> : vector<8x16xf32>
    %123 = vector.multi_reduction <add>, %110, %cst_58 [2] : vector<8x16x16xf32> to vector<8x16xf32>
    %cst_59 = arith.constant dense<0.000000e+00> : vector<8xf32>
    %124 = vector.multi_reduction <add>, %123, %cst_59 [1] : vector<8x16xf32> to vector<8xf32>
    %125 = vector.shape_cast %124 : vector<8xf32> to vector<8x1xf32>
    %126 = vector.shape_cast %125 : vector<8x1xf32> to vector<8x1xf32>
    %127 = vector.broadcast %126 : vector<8x1xf32> to vector<8x128xf32>
    %c0_60 = arith.constant 0 : index
    %c0_61 = arith.constant 0 : index
    %128 = vector.load %arg7[%c0_60, %c0_61] : memref<8x128xf32, #tpu.memory_space<vmem>>, vector<8x128xf32>
    tpu.vector_store %arg7[%c0_60, %c0_61], %127 {strides = array<i32>} : memref<8x128xf32, #tpu.memory_space<vmem>>, vector<8x128xf32>,
    return
  }
  func.func @transform_0(%arg0: i32) -> i32 {
    %c0_i32 = arith.constant 0 : i32
    %c0_i32_0 = arith.constant 0 : i32
    return %c0_i32 : i32
  }
  func.func @transform_1(%arg0: i32) -> (i32, i32, i32) {
    %c0_i32 = arith.constant 0 : i32
    %c0_i32_0 = arith.constant 0 : i32
    %c0_i32_1 = arith.constant 0 : i32
    return %arg0, %c0_i32, %c0_i32_0 : i32, i32, i32
  }
  func.func @transform_2(%arg0: i32) -> (i32, i32, i32) {
    %c0_i32 = arith.constant 0 : i32
    %c0_i32_0 = arith.constant 0 : i32
    %c0_i32_1 = arith.constant 0 : i32
    return %arg0, %c0_i32, %c0_i32_0 : i32, i32, i32
  }
  func.func @transform_3(%arg0: i32) -> (i32, i32, i32) {
    %c0_i32 = arith.constant 0 : i32
    %c0_i32_0 = arith.constant 0 : i32
    %c0_i32_1 = arith.constant 0 : i32
    return %arg0, %c0_i32, %c0_i32_0 : i32, i32, i32
  }
  func.func @transform_4(%arg0: i32) -> (i32, i32) {
    %c0_i32 = arith.constant 0 : i32
    %c0_i32_0 = arith.constant 0 : i32
    return %arg0, %c0_i32 : i32, i32
  }
  func.func @transform_5(%arg0: i32) -> (i32, i32) {
    %c0_i32 = arith.constant 0 : i32
    %c0_i32_0 = arith.constant 0 : i32
    return %arg0, %c0_i32 : i32, i32
  }
  func.func @transform_6(%arg0: i32) -> (i32, i32) {
    %c0_i32 = arith.constant 0 : i32
    %c0_i32_0 = arith.constant 0 : i32
    return %arg0, %c0_i32 : i32, i32
  }
}

</mosaic_0001>

<llo_original>
// kernel: uncertainty_aware_structure_loss.1
$region0: #{uncertainty_aware_structure_loss.1}
  #allocation0 [shape = 'u32[]', space=smem, size = 0x4, offset = 0x4, fixed_abs, tag = 'smem constant byte address 0x4 - core index']
  #allocation1 [shape = 'u32[144,128]{1,0:T(1,128)}', space=vmem, size = 0x12000, scoped, tag = 'internal scratch']
  #allocation2 [shape = 'f32[8,16,16]{2,1,0:T(8,128)}', space=vmem, size = 0x10000, scoped, tag = 'scratch operand']
  #allocation3 [shape = 'f32[1]{0:T(128)S(6)}', space=smem, size = 0x200, scoped, tag = 'scoped memory for uncertainty_aware_structure_loss.1']
  %s0 = inlined_call_operand.<no memory space> [shape: f32[1], index: 0, kind: input, shape index: {}]
  %s1 = inlined_call_operand.vmem [shape: f32[8,16,16], index: 1, kind: input, shape index: {}]
  %s2 = inlined_call_operand.vmem [shape: f32[8,16,16], index: 2, kind: input, shape index: {}]
  %s3 = inlined_call_operand.vmem [shape: f32[8,16,16], index: 3, kind: input, shape index: {}]
  %s4 = inlined_call_operand.vmem [shape: f32[8,128], index: 4, kind: output, shape index: {0}]
  %s5 = inlined_call_operand.vmem [shape: f32[8,128], index: 5, kind: output, shape index: {1}]
  %s6 = inlined_call_operand.vmem [shape: f32[8,128], index: 6, kind: output, shape index: {2}]
  %7 = xla_tuple %s4, %s5, %s6
  %s8 = sld [smem:[#allocation0]]
  $region42: #{uncertainty_aware_structure_loss.1} parent=0
    _
  %s10 = ssub.s32 1, %s8
  %s11 = scalar_select 0, %s10, %s8
  %12 = sst [smem:[#allocation3]] %s0
  // Predicated region
  $region2: #{uncertainty_aware_structure_loss.1} parent=0 // pred_check
    _
  $region3: #{uncertainty_aware_structure_loss.1} parent=0 // pred_check_branch
    %14 = sbr.rel (0) target = $region5
  $region4: #{uncertainty_aware_structure_loss.1} parent=0 // pred_region
    _
  $region5: #{uncertainty_aware_structure_loss.1} parent=0 // pred_fallthru
    _
  // Predicated region
  $region6: #{uncertainty_aware_structure_loss.1} parent=0 // pred_check
    _
  $region7: #{uncertainty_aware_structure_loss.1} parent=0 // pred_check_branch
    %16 = sbr.rel (0) target = $region9
  $region8: #{uncertainty_aware_structure_loss.1} parent=0 // pred_region
    _
  $region9: #{uncertainty_aware_structure_loss.1} parent=0 // pred_fallthru
    _
  // Predicated region
  $region10: #{uncertainty_aware_structure_loss.1} parent=0 // pred_check
    _
  $region11: #{uncertainty_aware_structure_loss.1} parent=0 // pred_check_branch
    %18 = sbr.rel (0) target = $region13
  $region12: #{uncertainty_aware_structure_loss.1} parent=0 // pred_region
    _
  $region13: #{uncertainty_aware_structure_loss.1} parent=0 // pred_fallthru
    _
  // Predicated region
  $region14: #{uncertainty_aware_structure_loss.1} parent=0 // pred_check
    _
  $region15: #{uncertainty_aware_structure_loss.1} parent=0 // pred_check_branch
    %20 = sbr.rel (0) target = $region17
  $region16: #{uncertainty_aware_structure_loss.1} parent=0 // pred_region
    _
  $region17: #{uncertainty_aware_structure_loss.1} parent=0 // pred_fallthru
    _
  %v22 = vld [vmem:[%s1] sm:$0xff]
  %v23 = vld [vmem:[%s1 + $0x8] sm:$0xff]
  %v24 = vld [vmem:[%s1 + $0x10] sm:$0xff]
  %v25 = vld [vmem:[%s1 + $0x18] sm:$0xff]
  %v26 = vld [vmem:[%s1 + $0x20] sm:$0xff]
  %v27 = vld [vmem:[%s1 + $0x28] sm:$0xff]
  %v28 = vld [vmem:[%s1 + $0x30] sm:$0xff]
  %v29 = vld [vmem:[%s1 + $0x38] sm:$0xff]
  %v30 = vld [vmem:[%s1 + $0x40] sm:$0xff]
  %v31 = vld [vmem:[%s1 + $0x48] sm:$0xff]
  %v32 = vld [vmem:[%s1 + $0x50] sm:$0xff]
  %v33 = vld [vmem:[%s1 + $0x58] sm:$0xff]
  %v34 = vld [vmem:[%s1 + $0x60] sm:$0xff]
  %v35 = vld [vmem:[%s1 + $0x68] sm:$0xff]
  %v36 = vld [vmem:[%s1 + $0x70] sm:$0xff]
  %v37 = vld [vmem:[%s1 + $0x78] sm:$0xff]
  %v38 = vld [vmem:[%s2] sm:$0xff]
  %v39 = vld [vmem:[%s2 + $0x8] sm:$0xff]
  %v40 = vld [vmem:[%s2 + $0x10] sm:$0xff]
  %v41 = vld [vmem:[%s2 + $0x18] sm:$0xff]
  %v42 = vld [vmem:[%s2 + $0x20] sm:$0xff]
  %v43 = vld [vmem:[%s2 + $0x28] sm:$0xff]
  %v44 = vld [vmem:[%s2 + $0x30] sm:$0xff]
  %v45 = vld [vmem:[%s2 + $0x38] sm:$0xff]
  %v46 = vld [vmem:[%s2 + $0x40] sm:$0xff]
  %v47 = vld [vmem:[%s2 + $0x48] sm:$0xff]
  %v48 = vld [vmem:[%s2 + $0x50] sm:$0xff]
  %v49 = vld [vmem:[%s2 + $0x58] sm:$0xff]
  %v50 = vld [vmem:[%s2 + $0x60] sm:$0xff]
  %v51 = vld [vmem:[%s2 + $0x68] sm:$0xff]
  %v52 = vld [vmem:[%s2 + $0x70] sm:$0xff]
  %v53 = vld [vmem:[%s2 + $0x78] sm:$0xff]
  %v54 = vld [vmem:[%s3] sm:$0xff]
  %v55 = vld [vmem:[%s3 + $0x8] sm:$0xff]
  %v56 = vld [vmem:[%s3 + $0x10] sm:$0xff]
  %v57 = vld [vmem:[%s3 + $0x18] sm:$0xff]
  %v58 = vld [vmem:[%s3 + $0x20] sm:$0xff]
  %v59 = vld [vmem:[%s3 + $0x28] sm:$0xff]
  %v60 = vld [vmem:[%s3 + $0x30] sm:$0xff]
  %v61 = vld [vmem:[%s3 + $0x38] sm:$0xff]
  %v62 = vld [vmem:[%s3 + $0x40] sm:$0xff]
  %v63 = vld [vmem:[%s3 + $0x48] sm:$0xff]
  %v64 = vld [vmem:[%s3 + $0x50] sm:$0xff]
  %v65 = vld [vmem:[%s3 + $0x58] sm:$0xff]
  %v66 = vld [vmem:[%s3 + $0x60] sm:$0xff]
  %v67 = vld [vmem:[%s3 + $0x68] sm:$0xff]
  %v68 = vld [vmem:[%s3 + $0x70] sm:$0xff]
  %v69 = vld [vmem:[%s3 + $0x78] sm:$0xff]
  %s70 = sld [smem:[#allocation3]]
  %v71 = vlaneseq
  %v72 = vshrl.u32 %v71, 7
  %v73 = vadd.s32 %v72, 8
  %v74 = vlaneseq
  %v75 = vand.u32 %v74, 127
  %v76 = vsub.s32 %v72, %v75
  %v77 = vsub.s32 %v73, %v75
  %vm78 = vcmp.lt.s32.totalorder %v76, 0
  %v79 = vsub.s32 0, %v76
  %v80 = vsel %vm78, %v79, %v76
  %vm81 = vcmp.lt.s32.totalorder %v77, 0
  %v82 = vsub.s32 0, %v77
  %v83 = vsel %vm81, %v82, %v77
  %vm84 = vcmp.le.s32.totalorder %v80, 15
  %vm85 = vcmp.le.s32.totalorder %v83, 15
  %v86 = vsel %vm84, 1.0, 0.0
  %v87 = vsel %vm85, 1.0, 0.0
  %v88 = vpack.c.bf16 %v87, %v86
  %v89 = vpack.c.bf16 %v39, %v38
  %v90 = vpack.c.bf16 %v41, %v40
  %v91 = vpack.c.bf16 %v43, %v42
  %v92 = vpack.c.bf16 %v45, %v44
  %v93 = vpack.c.bf16 %v47, %v46
  %v94 = vpack.c.bf16 %v49, %v48
  %v95 = vpack.c.bf16 %v51, %v50
  %v96 = vpack.c.bf16 %v53, %v52
  %vm97 = vcmask 130048
  %v99 = vsel %vm97, %v89, 0
  %v102 = vsel %vm97, %v90, 0
  %v105 = vsel %vm97, %v91, 0
  %v108 = vsel %vm97, %v92, 0
  %v111 = vsel %vm97, %v93, 0
  %v114 = vsel %vm97, %v94, 0
  %v117 = vsel %vm97, %v95, 0
  %v120 = vsel %vm97, %v96, 0
  %122 = vmatprep.subr.bf16.mxu0 0
  %123 = vmatpush1.bf16.msra.mxu0 %v88
  %124 = vmatprep.subr.bf16.mxu0 0
  %125 = vmatpush1.bf16.msra.mxu0 0
  %126 = vmatprep.subr.bf16.mxu0 0
  %127 = vmatpush1.bf16.msra.mxu0 0
  %128 = vmatprep.subr.bf16.mxu0 0
  %129 = vmatpush1.bf16.msra.mxu0 0
  %130 = vmatprep.subr.bf16.mxu0 0
  %131 = vmatpush1.bf16.msra.mxu0 0
  %132 = vmatprep.subr.bf16.mxu0 0
  %133 = vmatpush1.bf16.msra.mxu0 0
  %134 = vmatprep.subr.bf16.mxu0 0
  %135 = vmatpush1.bf16.msra.mxu0 0
  %136 = vmatprep.subr.bf16.mxu0 0
  %137 = vmatpush1.bf16.msra.mxu0 0
  %138 = vmatprep.subr.bf16.mxu0 0
  %139 = vmatpush1.bf16.msra.mxu0 0
  %140 = vmatprep.subr.bf16.mxu0 0
  %141 = vmatpush1.bf16.msra.mxu0 0
  %142 = vmatprep.subr.bf16.mxu0 0
  %143 = vmatpush1.bf16.msra.mxu0 0
  %144 = vmatprep.subr.bf16.mxu0 0
  %145 = vmatpush1.bf16.msra.mxu0 0
  %146 = vmatprep.subr.bf16.mxu0 0
  %147 = vmatpush1.bf16.msra.mxu0 0
  %148 = vmatprep.subr.bf16.mxu0 0
  %149 = vmatpush1.bf16.msra.mxu0 0
  %150 = vmatprep.subr.bf16.mxu0 0
  %151 = vmatpush1.bf16.msra.mxu0 0
  %152 = vmatprep.subr.bf16.mxu0 0
  %153 = vmatpush1.bf16.msra.mxu0 0
  %154 = vmatprep.mubr.bf16.mxu0 0
  %155 = vmatmul.mubr.bf16.gmra.mrb[0].mxu0 %v99
  %v156 = vpop.f32.mrb[0].mxu0
  %v157 = vadd.f32 0.0, %v156
  %v158 = vpop.f32.mrb[0].mxu0
  %v159 = vpop.f32.mrb[0].mxu0
  %v160 = vadd.f32 0.0, %v159
  %v161 = vpop.f32.mrb[0].mxu0
  %162 = vmatprep.mubr.bf16.mxu0 0
  %163 = vmatmul.mubr.bf16.gmra.mrb[0].mxu0 %v102
  %v164 = vpop.f32.mrb[0].mxu0
  %v165 = vadd.f32 0.0, %v164
  %v166 = vpop.f32.mrb[0].mxu0
  %v167 = vpop.f32.mrb[0].mxu0
  %v168 = vadd.f32 0.0, %v167
  %v169 = vpop.f32.mrb[0].mxu0
  %170 = vmatprep.mubr.bf16.mxu0 0
  %171 = vmatmul.mubr.bf16.gmra.mrb[0].mxu0 %v105
  %v172 = vpop.f32.mrb[0].mxu0
  %v173 = vadd.f32 0.0, %v172
  %v174 = vpop.f32.mrb[0].mxu0
  %v175 = vpop.f32.mrb[0].mxu0
  %v176 = vadd.f32 0.0, %v175
  %v177 = vpop.f32.mrb[0].mxu0
  %178 = vmatprep.mubr.bf16.mxu0 0
  %179 = vmatmul.mubr.bf16.gmra.mrb[0].mxu0 %v108
  %v180 = vpop.f32.mrb[0].mxu0
  %v181 = vadd.f32 0.0, %v180
  %v182 = vpop.f32.mrb[0].mxu0
  %v183 = vpop.f32.mrb[0].mxu0
  %v184 = vadd.f32 0.0, %v183
  %v185 = vpop.f32.mrb[0].mxu0
  %186 = vmatprep.mubr.bf16.mxu0 0
  %187 = vmatmul.mubr.bf16.gmra.mrb[0].mxu0 %v111
  %v188 = vpop.f32.mrb[0].mxu0
  %v189 = vadd.f32 0.0, %v188
  %v190 = vpop.f32.mrb[0].mxu0
  %v191 = vpop.f32.mrb[0].mxu0
  %v192 = vadd.f32 0.0, %v191
  %v193 = vpop.f32.mrb[0].mxu0
  %194 = vmatprep.mubr.bf16.mxu0 0
  %195 = vmatmul.mubr.bf16.gmra.mrb[0].mxu0 %v114
  %v196 = vpop.f32.mrb[0].mxu0
  %v197 = vadd.f32 0.0, %v196
  %v198 = vpop.f32.mrb[0].mxu0
  %v199 = vpop.f32.mrb[0].mxu0
  %v200 = vadd.f32 0.0, %v199
  %v201 = vpop.f32.mrb[0].mxu0
  %202 = vmatprep.mubr.bf16.mxu0 0
  %203 = vmatmul.mubr.bf16.gmra.mrb[0].mxu0 %v117
  %v204 = vpop.f32.mrb[0].mxu0
  %v205 = vadd.f32 0.0, %v204
  %v206 = vpop.f32.mrb[0].mxu0
  %v207 = vpop.f32.mrb[0].mxu0
  %v208 = vadd.f32 0.0, %v207
  %v209 = vpop.f32.mrb[0].mxu0
  %210 = vmatprep.mubr.bf16.mxu0 0
  %211 = vmatmul.mubr.bf16.gmra.mrb[0].mxu0 %v120
  %v212 = vpop.f32.mrb[0].mxu0
  %v213 = vadd.f32 0.0, %v212
  %v214 = vpop.f32.mrb[0].mxu0
  %v215 = vpop.f32.mrb[0].mxu0
  %v216 = vadd.f32 0.0, %v215
  %v217 = vpop.f32.mrb[0].mxu0
  %218 = vdwg.mxu0
  %v219 = vpack.c.bf16 %v160, %v157
  %v220 = vpack.c.bf16 %v168, %v165
  %v221 = vpack.c.bf16 %v176, %v173
  %v222 = vpack.c.bf16 %v184, %v181
  %v223 = vpack.c.bf16 %v192, %v189
  %v224 = vpack.c.bf16 %v200, %v197
  %v225 = vpack.c.bf16 %v208, %v205
  %v226 = vpack.c.bf16 %v216, %v213
  %v228 = vsel %vm97, %v88, 0
  %230 = vmatprep.subr.bf16.mxu0 0
  %231 = vmatpush1.bf16.msra.mxu0 %v219
  %232 = vmatprep.subr.bf16.mxu0 0
  %233 = vmatpush1.bf16.msra.mxu0 0
  %234 = vmatprep.subr.bf16.mxu0 0
  %235 = vmatpush1.bf16.msra.mxu0 0
  %236 = vmatprep.subr.bf16.mxu0 0
  %237 = vmatpush1.bf16.msra.mxu0 0
  %238 = vmatprep.subr.bf16.mxu0 0
  %239 = vmatpush1.bf16.msra.mxu0 0
  %240 = vmatprep.subr.bf16.mxu0 0
  %241 = vmatpush1.bf16.msra.mxu0 0
  %242 = vmatprep.subr.bf16.mxu0 0
  %243 = vmatpush1.bf16.msra.mxu0 0
  %244 = vmatprep.subr.bf16.mxu0 0
  %245 = vmatpush1.bf16.msra.mxu0 0
  %246 = vmatprep.subr.bf16.mxu0 0
  %247 = vmatpush1.bf16.msra.mxu0 0
  %248 = vmatprep.subr.bf16.mxu0 0
  %249 = vmatpush1.bf16.msra.mxu0 0
  %250 = vmatprep.subr.bf16.mxu0 0
  %251 = vmatpush1.bf16.msra.mxu0 0
  %252 = vmatprep.subr.bf16.mxu0 0
  %253 = vmatpush1.bf16.msra.mxu0 0
  %254 = vmatprep.subr.bf16.mxu0 0
  %255 = vmatpush1.bf16.msra.mxu0 0
  %256 = vmatprep.subr.bf16.mxu0 0
  %257 = vmatpush1.bf16.msra.mxu0 0
  %258 = vmatprep.subr.bf16.mxu0 0
  %259 = vmatpush1.bf16.msra.mxu0 0
  %260 = vmatprep.subr.bf16.mxu0 0
  %261 = vmatpush1.bf16.msra.mxu0 0
  %262 = vmatprep.mubr.bf16.mxu0 0
  %263 = vmatmul.mubr.bf16.gmra.mrb[0].mxu0 %v228
  %v264 = vpop.f32.mrb[0].mxu0
  %v265 = vadd.f32 0.0, %v264
  %v266 = vpop.f32.mrb[0].mxu0
  %v267 = vpop.f32.mrb[0].mxu0
  %v268 = vadd.f32 0.0, %v267
  %v269 = vpop.f32.mrb[0].mxu0
  %270 = vdwg.mxu0
  %271 = vst.msk [vmem:[#allocation2] sm:$0xff] %vm97, %v265
  %272 = vst.msk [vmem:[#allocation2 + $0x8] sm:$0xff] %vm97, %v268
  %273 = vmatprep.subr.bf16.mxu0 0
  %274 = vmatpush1.bf16.msra.mxu0 %v220
  %275 = vmatprep.subr.bf16.mxu0 0
  %276 = vmatpush1.bf16.msra.mxu0 0
  %277 = vmatprep.subr.bf16.mxu0 0
  %278 = vmatpush1.bf16.msra.mxu0 0
  %279 = vmatprep.subr.bf16.mxu0 0
  %280 = vmatpush1.bf16.msra.mxu0 0
  %281 = vmatprep.subr.bf16.mxu0 0
  %282 = vmatpush1.bf16.msra.mxu0 0
  %283 = vmatprep.subr.bf16.mxu0 0
  %284 = vmatpush1.bf16.msra.mxu0 0
  %285 = vmatprep.subr.bf16.mxu0 0
  %286 = vmatpush1.bf16.msra.mxu0 0
  %287 = vmatprep.subr.bf16.mxu0 0
  %288 = vmatpush1.bf16.msra.mxu0 0
  %289 = vmatprep.subr.bf16.mxu0 0
  %290 = vmatpush1.bf16.msra.mxu0 0
  %291 = vmatprep.subr.bf16.mxu0 0
  %292 = vmatpush1.bf16.msra.mxu0 0
  %293 = vmatprep.subr.bf16.mxu0 0
  %294 = vmatpush1.bf16.msra.mxu0 0
  %295 = vmatprep.subr.bf16.mxu0 0
  %296 = vmatpush1.bf16.msra.mxu0 0
  %297 = vmatprep.subr.bf16.mxu0 0
  %298 = vmatpush1.bf16.msra.mxu0 0
  %299 = vmatprep.subr.bf16.mxu0 0
  %300 = vmatpush1.bf16.msra.mxu0 0
  %301 = vmatprep.subr.bf16.mxu0 0
  %302 = vmatpush1.bf16.msra.mxu0 0
  %303 = vmatprep.subr.bf16.mxu0 0
  %304 = vmatpush1.bf16.msra.mxu0 0
  %305 = vmatprep.mubr.bf16.mxu0 0
  %306 = vmatmul.mubr.bf16.gmra.mrb[0].mxu0 %v228
  %v307 = vpop.f32.mrb[0].mxu0
  %v308 = vadd.f32 0.0, %v307
  %v309 = vpop.f32.mrb[0].mxu0
  %v310 = vpop.f32.mrb[0].mxu0
  %v311 = vadd.f32 0.0, %v310
  %v312 = vpop.f32.mrb[0].mxu0
  %313 = vdwg.mxu0
  %s314 = scalar_lea.vmem [#allocation2], 16
  %315 = vst.msk [vmem:[%s314] sm:$0xff] %vm97, %v308
  %316 = vst.msk [vmem:[%s314 + $0x8] sm:$0xff] %vm97, %v311
  %317 = vmatprep.subr.bf16.mxu0 0
  %318 = vmatpush1.bf16.msra.mxu0 %v221
  %319 = vmatprep.subr.bf16.mxu0 0
  %320 = vmatpush1.bf16.msra.mxu0 0
  %321 = vmatprep.subr.bf16.mxu0 0
  %322 = vmatpush1.bf16.msra.mxu0 0
  %323 = vmatprep.subr.bf16.mxu0 0
  %324 = vmatpush1.bf16.msra.mxu0 0
  %325 = vmatprep.subr.bf16.mxu0 0
  %326 = vmatpush1.bf16.msra.mxu0 0
  %327 = vmatprep.subr.bf16.mxu0 0
  %328 = vmatpush1.bf16.msra.mxu0 0
  %329 = vmatprep.subr.bf16.mxu0 0
  %330 = vmatpush1.bf16.msra.mxu0 0
  %331 = vmatprep.subr.bf16.mxu0 0
  %332 = vmatpush1.bf16.msra.mxu0 0
  %333 = vmatprep.subr.bf16.mxu0 0
  %334 = vmatpush1.bf16.msra.mxu0 0
  %335 = vmatprep.subr.bf16.mxu0 0
  %336 = vmatpush1.bf16.msra.mxu0 0
  %337 = vmatprep.subr.bf16.mxu0 0
  %338 = vmatpush1.bf16.msra.mxu0 0
  %339 = vmatprep.subr.bf16.mxu0 0
  %340 = vmatpush1.bf16.msra.mxu0 0
  %341 = vmatprep.subr.bf16.mxu0 0
  %342 = vmatpush1.bf16.msra.mxu0 0
  %343 = vmatprep.subr.bf16.mxu0 0
  %344 = vmatpush1.bf16.msra.mxu0 0
  %345 = vmatprep.subr.bf16.mxu0 0
  %346 = vmatpush1.bf16.msra.mxu0 0
  %347 = vmatprep.subr.bf16.mxu0 0
  %348 = vmatpush1.bf16.msra.mxu0 0
  %349 = vmatprep.mubr.bf16.mxu0 0
  %350 = vmatmul.mubr.bf16.gmra.mrb[0].mxu0 %v228
  %v351 = vpop.f32.mrb[0].mxu0
  %v352 = vadd.f32 0.0, %v351
  %v353 = vpop.f32.mrb[0].mxu0
  %v354 = vpop.f32.mrb[0].mxu0
  %v355 = vadd.f32 0.0, %v354
  %v356 = vpop.f32.mrb[0].mxu0
  %357 = vdwg.mxu0
  %s358 = scalar_lea.vmem [#allocation2], 32
  %359 = vst.msk [vmem:[%s358] sm:$0xff] %vm97, %v352
  %360 = vst.msk [vmem:[%s358 + $0x8] sm:$0xff] %vm97, %v355
  %361 = vmatprep.subr.bf16.mxu0 0
  %362 = vmatpush1.bf16.msra.mxu0 %v222
  %363 = vmatprep.subr.bf16.mxu0 0
  %364 = vmatpush1.bf16.msra.mxu0 0
  %365 = vmatprep.subr.bf16.mxu0 0
  %366 = vmatpush1.bf16.msra.mxu0 0
  %367 = vmatprep.subr.bf16.mxu0 0
  %368 = vmatpush1.bf16.msra.mxu0 0
  %369 = vmatprep.subr.bf16.mxu0 0
  %370 = vmatpush1.bf16.msra.mxu0 0
  %371 = vmatprep.subr.bf16.mxu0 0
  %372 = vmatpush1.bf16.msra.mxu0 0
  %373 = vmatprep.subr.bf16.mxu0 0
  %374 = vmatpush1.bf16.msra.mxu0 0
  %375 = vmatprep.subr.bf16.mxu0 0
  %376 = vmatpush1.bf16.msra.mxu0 0
  %377 = vmatprep.subr.bf16.mxu0 0
  %378 = vmatpush1.bf16.msra.mxu0 0
  %379 = vmatprep.subr.bf16.mxu0 0
  %380 = vmatpush1.bf16.msra.mxu0 0
  %381 = vmatprep.subr.bf16.mxu0 0
  %382 = vmatpush1.bf16.msra.mxu0 0
  %383 = vmatprep.subr.bf16.mxu0 0
  %384 = vmatpush1.bf16.msra.mxu0 0
  %385 = vmatprep.subr.bf16.mxu0 0
  %386 = vmatpush1.bf16.msra.mxu0 0
  %387 = vmatprep.subr.bf16.mxu0 0
  %388 = vmatpush1.bf16.msra.mxu0 0
  %389 = vmatprep.subr.bf16.mxu0 0
  %390 = vmatpush1.bf16.msra.mxu0 0
  %391 = vmatprep.subr.bf16.mxu0 0
  %392 = vmatpush1.bf16.msra.mxu0 0
  %393 = vmatprep.mubr.bf16.mxu0 0
  %394 = vmatmul.mubr.bf16.gmra.mrb[0].mxu0 %v228
  %v395 = vpop.f32.mrb[0].mxu0
  %v396 = vadd.f32 0.0, %v395
  %v397 = vpop.f32.mrb[0].mxu0
  %v398 = vpop.f32.mrb[0].mxu0
  %v399 = vadd.f32 0.0, %v398
  %v400 = vpop.f32.mrb[0].mxu0
  %401 = vdwg.mxu0
  %s402 = scalar_lea.vmem [#allocation2], 48
  %403 = vst.msk [vmem:[%s402] sm:$0xff] %vm97, %v396
  %404 = vst.msk [vmem:[%s402 + $0x8] sm:$0xff] %vm97, %v399
  %405 = vmatprep.subr.bf16.mxu0 0
  %406 = vmatpush1.bf16.msra.mxu0 %v223
  %407 = vmatprep.subr.bf16.mxu0 0
  %408 = vmatpush1.bf16.msra.mxu0 0
  %409 = vmatprep.subr.bf16.mxu0 0
  %410 = vmatpush1.bf16.msra.mxu0 0
  %411 = vmatprep.subr.bf16.mxu0 0
  %412 = vmatpush1.bf16.msra.mxu0 0
  %413 = vmatprep.subr.bf16.mxu0 0
  %414 = vmatpush1.bf16.msra.mxu0 0
  %415 = vmatprep.subr.bf16.mxu0 0
  %416 = vmatpush1.bf16.msra.mxu0 0
  %417 = vmatprep.subr.bf16.mxu0 0
  %418 = vmatpush1.bf16.msra.mxu0 0
  %419 = vmatprep.subr.bf16.mxu0 0
  %420 = vmatpush1.bf16.msra.mxu0 0
  %421 = vmatprep.subr.bf16.mxu0 0
  %422 = vmatpush1.bf16.msra.mxu0 0
  %423 = vmatprep.subr.bf16.mxu0 0
  %424 = vmatpush1.bf16.msra.mxu0 0
  %425 = vmatprep.subr.bf16.mxu0 0
  %426 = vmatpush1.bf16.msra.mxu0 0
  %427 = vmatprep.subr.bf16.mxu0 0
  %428 = vmatpush1.bf16.msra.mxu0 0
  %429 = vmatprep.subr.bf16.mxu0 0
  %430 = vmatpush1.bf16.msra.mxu0 0
  %431 = vmatprep.subr.bf16.mxu0 0
  %432 = vmatpush1.bf16.msra.mxu0 0
  %433 = vmatprep.subr.bf16.mxu0 0
  %434 = vmatpush1.bf16.msra.mxu0 0
  %435 = vmatprep.subr.bf16.mxu0 0
  %436 = vmatpush1.bf16.msra.mxu0 0
  %437 = vmatprep.mubr.bf16.mxu0 0
  %438 = vmatmul.mubr.bf16.gmra.mrb[0].mxu0 %v228
  %v439 = vpop.f32.mrb[0].mxu0
  %v440 = vadd.f32 0.0, %v439
  %v441 = vpop.f32.mrb[0].mxu0
  %v442 = vpop.f32.mrb[0].mxu0
  %v443 = vadd.f32 0.0, %v442
  %v444 = vpop.f32.mrb[0].mxu0
  %445 = vdwg.mxu0
  %s446 = scalar_lea.vmem [#allocation2], 64
  %447 = vst.msk [vmem:[%s446] sm:$0xff] %vm97, %v440
  %448 = vst.msk [vmem:[%s446 + $0x8] sm:$0xff] %vm97, %v443
  %449 = vmatprep.subr.bf16.mxu0 0
  %450 = vmatpush1.bf16.msra.mxu0 %v224
  %451 = vmatprep.subr.bf16.mxu0 0
  %452 = vmatpush1.bf16.msra.mxu0 0
  %453 = vmatprep.subr.bf16.mxu0 0
  %454 = vmatpush1.bf16.msra.mxu0 0
  %455 = vmatprep.subr.bf16.mxu0 0
  %456 = vmatpush1.bf16.msra.mxu0 0
  %457 = vmatprep.subr.bf16.mxu0 0
  %458 = vmatpush1.bf16.msra.mxu0 0
  %459 = vmatprep.subr.bf16.mxu0 0
  %460 = vmatpush1.bf16.msra.mxu0 0
  %461 = vmatprep.subr.bf16.mxu0 0
  %462 = vmatpush1.bf16.msra.mxu0 0
  %463 = vmatprep.subr.bf16.mxu0 0
  %464 = vmatpush1.bf16.msra.mxu0 0
  %465 = vmatprep.subr.bf16.mxu0 0
  %466 = vmatpush1.bf16.msra.mxu0 0
  %467 = vmatprep.subr.bf16.mxu0 0
  %468 = vmatpush1.bf16.msra.mxu0 0
  %469 = vmatprep.subr.bf16.mxu0 0
  %470 = vmatpush1.bf16.msra.mxu0 0
  %471 = vmatprep.subr.bf16.mxu0 0
  %472 = vmatpush1.bf16.msra.mxu0 0
  %473 = vmatprep.subr.bf16.mxu0 0
  %474 = vmatpush1.bf16.msra.mxu0 0
  %475 = vmatprep.subr.bf16.mxu0 0
  %476 = vmatpush1.bf16.msra.mxu0 0
  %477 = vmatprep.subr.bf16.mxu0 0
  %478 = vmatpush1.bf16.msra.mxu0 0
  %479 = vmatprep.subr.bf16.mxu0 0
  %480 = vmatpush1.bf16.msra.mxu0 0
  %481 = vmatprep.mubr.bf16.mxu0 0
  %482 = vmatmul.mubr.bf16.gmra.mrb[0].mxu0 %v228
  %v483 = vpop.f32.mrb[0].mxu0
  %v484 = vadd.f32 0.0, %v483
  %v485 = vpop.f32.mrb[0].mxu0
  %v486 = vpop.f32.mrb[0].mxu0
  %v487 = vadd.f32 0.0, %v486
  %v488 = vpop.f32.mrb[0].mxu0
  %489 = vdwg.mxu0
  %s490 = scalar_lea.vmem [#allocation2], 80
  %491 = vst.msk [vmem:[%s490] sm:$0xff] %vm97, %v484
  %492 = vst.msk [vmem:[%s490 + $0x8] sm:$0xff] %vm97, %v487
  %493 = vmatprep.subr.bf16.mxu0 0
  %494 = vmatpush1.bf16.msra.mxu0 %v225
  %495 = vmatprep.subr.bf16.mxu0 0
  %496 = vmatpush1.bf16.msra.mxu0 0
  %497 = vmatprep.subr.bf16.mxu0 0
  %498 = vmatpush1.bf16.msra.mxu0 0
  %499 = vmatprep.subr.bf16.mxu0 0
  %500 = vmatpush1.bf16.msra.mxu0 0
  %501 = vmatprep.subr.bf16.mxu0 0
  %502 = vmatpush1.bf16.msra.mxu0 0
  %503 = vmatprep.subr.bf16.mxu0 0
  %504 = vmatpush1.bf16.msra.mxu0 0
  %505 = vmatprep.subr.bf16.mxu0 0
  %506 = vmatpush1.bf16.msra.mxu0 0
  %507 = vmatprep.subr.bf16.mxu0 0
  %508 = vmatpush1.bf16.msra.mxu0 0
  %509 = vmatprep.subr.bf16.mxu0 0
  %510 = vmatpush1.bf16.msra.mxu0 0
  %511 = vmatprep.subr.bf16.mxu0 0
  %512 = vmatpush1.bf16.msra.mxu0 0
  %513 = vmatprep.subr.bf16.mxu0 0
  %514 = vmatpush1.bf16.msra.mxu0 0
  %515 = vmatprep.subr.bf16.mxu0 0
  %516 = vmatpush1.bf16.msra.mxu0 0
  %517 = vmatprep.subr.bf16.mxu0 0
  %518 = vmatpush1.bf16.msra.mxu0 0
  %519 = vmatprep.subr.bf16.mxu0 0
  %520 = vmatpush1.bf16.msra.mxu0 0
  %521 = vmatprep.subr.bf16.mxu0 0
  %522 = vmatpush1.bf16.msra.mxu0 0
  %523 = vmatprep.subr.bf16.mxu0 0
  %524 = vmatpush1.bf16.msra.mxu0 0
  %525 = vmatprep.mubr.bf16.mxu0 0
  %526 = vmatmul.mubr.bf16.gmra.mrb[0].mxu0 %v228
  %v527 = vpop.f32.mrb[0].mxu0
  %v528 = vadd.f32 0.0, %v527
  %v529 = vpop.f32.mrb[0].mxu0
  %v530 = vpop.f32.mrb[0].mxu0
  %v531 = vadd.f32 0.0, %v530
  %v532 = vpop.f32.mrb[0].mxu0
  %533 = vdwg.mxu0
  %s534 = scalar_lea.vmem [#allocation2], 96
  %535 = vst.msk [vmem:[%s534] sm:$0xff] %vm97, %v528
  %536 = vst.msk [vmem:[%s534 + $0x8] sm:$0xff] %vm97, %v531
  %537 = vmatprep.subr.bf16.mxu0 0
  %538 = vmatpush1.bf16.msra.mxu0 %v226
  %539 = vmatprep.subr.bf16.mxu0 0
  %540 = vmatpush1.bf16.msra.mxu0 0
  %541 = vmatprep.subr.bf16.mxu0 0
  %542 = vmatpush1.bf16.msra.mxu0 0
  %543 = vmatprep.subr.bf16.mxu0 0
  %544 = vmatpush1.bf16.msra.mxu0 0
  %545 = vmatprep.subr.bf16.mxu0 0
  %546 = vmatpush1.bf16.msra.mxu0 0
  %547 = vmatprep.subr.bf16.mxu0 0
  %548 = vmatpush1.bf16.msra.mxu0 0
  %549 = vmatprep.subr.bf16.mxu0 0
  %550 = vmatpush1.bf16.msra.mxu0 0
  %551 = vmatprep.subr.bf16.mxu0 0
  %552 = vmatpush1.bf16.msra.mxu0 0
  %553 = vmatprep.subr.bf16.mxu0 0
  %554 = vmatpush1.bf16.msra.mxu0 0
  %555 = vmatprep.subr.bf16.mxu0 0
  %556 = vmatpush1.bf16.msra.mxu0 0
  %557 = vmatprep.subr.bf16.mxu0 0
  %558 = vmatpush1.bf16.msra.mxu0 0
  %559 = vmatprep.subr.bf16.mxu0 0
  %560 = vmatpush1.bf16.msra.mxu0 0
  %561 = vmatprep.subr.bf16.mxu0 0
  %562 = vmatpush1.bf16.msra.mxu0 0
  %563 = vmatprep.subr.bf16.mxu0 0
  %564 = vmatpush1.bf16.msra.mxu0 0
  %565 = vmatprep.subr.bf16.mxu0 0
  %566 = vmatpush1.bf16.msra.mxu0 0
  %567 = vmatprep.subr.bf16.mxu0 0
  %568 = vmatpush1.bf16.msra.mxu0 0
  %569 = vmatprep.mubr.bf16.mxu0 0
  %570 = vmatmul.mubr.bf16.gmra.mrb[0].mxu0 %v228
  %v571 = vpop.f32.mrb[0].mxu0
  %v572 = vadd.f32 0.0, %v571
  %v573 = vpop.f32.mrb[0].mxu0
  %v574 = vpop.f32.mrb[0].mxu0
  %v575 = vadd.f32 0.0, %v574
  %v576 = vpop.f32.mrb[0].mxu0
  %577 = vdwg.mxu0
  %s578 = scalar_lea.vmem [#allocation2], 112
  %579 = vst.msk [vmem:[%s578] sm:$0xff] %vm97, %v572
  %580 = vst.msk [vmem:[%s578 + $0x8] sm:$0xff] %vm97, %v575
  %v581 = vld [vmem:[#allocation2] sm:$0xff]
  %v582 = vld [vmem:[#allocation2 + $0x8] sm:$0xff]
  %v583 = vld [vmem:[#allocation2 + $0x10] sm:$0xff]
  %v584 = vld [vmem:[#allocation2 + $0x18] sm:$0xff]
  %v585 = vld [vmem:[#allocation2 + $0x20] sm:$0xff]
  %v586 = vld [vmem:[#allocation2 + $0x28] sm:$0xff]
  %v587 = vld [vmem:[#allocation2 + $0x30] sm:$0xff]
  %v588 = vld [vmem:[#allocation2 + $0x38] sm:$0xff]
  %v589 = vld [vmem:[#allocation2 + $0x40] sm:$0xff]
  %v590 = vld [vmem:[#allocation2 + $0x48] sm:$0xff]
  %v591 = vld [vmem:[#allocation2 + $0x50] sm:$0xff]
  %v592 = vld [vmem:[#allocation2 + $0x58] sm:$0xff]
  %v593 = vld [vmem:[#allocation2 + $0x60] sm:$0xff]
  %v594 = vld [vmem:[#allocation2 + $0x68] sm:$0xff]
  %v595 = vld [vmem:[#allocation2 + $0x70] sm:$0xff]
  %v596 = vld [vmem:[#allocation2 + $0x78] sm:$0xff]
  %v597 = vmul.f32 %v581, 0.0010405828
  %v598 = vmul.f32 %v582, 0.0010405828
  %v599 = vmul.f32 %v583, 0.0010405828
  %v600 = vmul.f32 %v584, 0.0010405828
  %v601 = vmul.f32 %v585, 0.0010405828
  %v602 = vmul.f32 %v586, 0.0010405828
  %v603 = vmul.f32 %v587, 0.0010405828
  %v604 = vmul.f32 %v588, 0.0010405828
  %v605 = vmul.f32 %v589, 0.0010405828
  %v606 = vmul.f32 %v590, 0.0010405828
  %v607 = vmul.f32 %v591, 0.0010405828
  %v608 = vmul.f32 %v592, 0.0010405828
  %v609 = vmul.f32 %v593, 0.0010405828
  %v610 = vmul.f32 %v594, 0.0010405828
  %v611 = vmul.f32 %v595, 0.0010405828
  %v612 = vmul.f32 %v596, 0.0010405828
  %v613 = vsub.f32 %v597, %v38
  %v614 = vsub.f32 %v598, %v39
  %v615 = vsub.f32 %v599, %v40
  %v616 = vsub.f32 %v600, %v41
  %v617 = vsub.f32 %v601, %v42
  %v618 = vsub.f32 %v602, %v43
  %v619 = vsub.f32 %v603, %v44
  %v620 = vsub.f32 %v604, %v45
  %v621 = vsub.f32 %v605, %v46
  %v622 = vsub.f32 %v606, %v47
  %v623 = vsub.f32 %v607, %v48
  %v624 = vsub.f32 %v608, %v49
  %v625 = vsub.f32 %v609, %v50
  %v626 = vsub.f32 %v610, %v51
  %v627 = vsub.f32 %v611, %v52
  %v628 = vsub.f32 %v612, %v53
  %v629 = vand.u32 2147483647, %v613
  %v630 = vand.u32 2147483647, %v614
  %v631 = vand.u32 2147483647, %v615
  %v632 = vand.u32 2147483647, %v616
  %v633 = vand.u32 2147483647, %v617
  %v634 = vand.u32 2147483647, %v618
  %v635 = vand.u32 2147483647, %v619
  %v636 = vand.u32 2147483647, %v620
  %v637 = vand.u32 2147483647, %v621
  %v638 = vand.u32 2147483647, %v622
  %v639 = vand.u32 2147483647, %v623
  %v640 = vand.u32 2147483647, %v624
  %v641 = vand.u32 2147483647, %v625
  %v642 = vand.u32 2147483647, %v626
  %v643 = vand.u32 2147483647, %v627
  %v644 = vand.u32 2147483647, %v628
  %v645 = vadd.f32 %v629, 1.0
  %v646 = vadd.f32 %v630, 1.0
  %v647 = vadd.f32 %v631, 1.0
  %v648 = vadd.f32 %v632, 1.0
  %v649 = vadd.f32 %v633, 1.0
  %v650 = vadd.f32 %v634, 1.0
  %v651 = vadd.f32 %v635, 1.0
  %v652 = vadd.f32 %v636, 1.0
  %v653 = vadd.f32 %v637, 1.0
  %v654 = vadd.f32 %v638, 1.0
  %v655 = vadd.f32 %v639, 1.0
  %v656 = vadd.f32 %v640, 1.0
  %v657 = vadd.f32 %v641, 1.0
  %v658 = vadd.f32 %v642, 1.0
  %v659 = vadd.f32 %v643, 1.0
  %v660 = vadd.f32 %v644, 1.0
  %v661 = vstv %s70
  %v662 = vmul.f32 %v661, %v54
  %v663 = vmul.f32 %v661, %v55
  %v664 = vmul.f32 %v661, %v56
  %v665 = vmul.f32 %v661, %v57
  %v666 = vmul.f32 %v661, %v58
  %v667 = vmul.f32 %v661, %v59
  %v668 = vmul.f32 %v661, %v60
  %v669 = vmul.f32 %v661, %v61
  %v670 = vmul.f32 %v661, %v62
  %v671 = vmul.f32 %v661, %v63
  %v672 = vmul.f32 %v661, %v64
  %v673 = vmul.f32 %v661, %v65
  %v674 = vmul.f32 %v661, %v66
  %v675 = vmul.f32 %v661, %v67
  %v676 = vmul.f32 %v661, %v68
  %v677 = vmul.f32 %v661, %v69
  %v678 = vadd.f32 %v645, %v662
  %v679 = vadd.f32 %v646, %v663
  %v680 = vadd.f32 %v647, %v664
  %v681 = vadd.f32 %v648, %v665
  %v682 = vadd.f32 %v649, %v666
  %v683 = vadd.f32 %v650, %v667
  %v684 = vadd.f32 %v651, %v668
  %v685 = vadd.f32 %v652, %v669
  %v686 = vadd.f32 %v653, %v670
  %v687 = vadd.f32 %v654, %v671
  %v688 = vadd.f32 %v655, %v672
  %v689 = vadd.f32 %v656, %v673
  %v690 = vadd.f32 %v657, %v674
  %v691 = vadd.f32 %v658, %v675
  %v692 = vadd.f32 %v659, %v676
  %v693 = vadd.f32 %v660, %v677
  %v694 = vand.u32 2147483647, %v22
  %v695 = vand.u32 2147483647, %v23
  %v696 = vand.u32 2147483647, %v24
  %v697 = vand.u32 2147483647, %v25
  %v698 = vand.u32 2147483647, %v26
  %v699 = vand.u32 2147483647, %v27
  %v700 = vand.u32 2147483647, %v28
  %v701 = vand.u32 2147483647, %v29
  %v702 = vand.u32 2147483647, %v30
  %v703 = vand.u32 2147483647, %v31
  %v704 = vand.u32 2147483647, %v32
  %v705 = vand.u32 2147483647, %v33
  %v706 = vand.u32 2147483647, %v34
  %v707 = vand.u32 2147483647, %v35
  %v708 = vand.u32 2147483647, %v36
  %v709 = vand.u32 2147483647, %v37
  %v710 = vsub.f32 0.0, %v694
  %v711 = vsub.f32 0.0, %v695
  %v712 = vsub.f32 0.0, %v696
  %v713 = vsub.f32 0.0, %v697
  %v714 = vsub.f32 0.0, %v698
  %v715 = vsub.f32 0.0, %v699
  %v716 = vsub.f32 0.0, %v700
  %v717 = vsub.f32 0.0, %v701
  %v718 = vsub.f32 0.0, %v702
  %v719 = vsub.f32 0.0, %v703
  %v720 = vsub.f32 0.0, %v704
  %v721 = vsub.f32 0.0, %v705
  %v722 = vsub.f32 0.0, %v706
  %v723 = vsub.f32 0.0, %v707
  %v724 = vsub.f32 0.0, %v708
  %v725 = vsub.f32 0.0, %v709
  %v726 = vmul.f32 %v710, 1.442695
  %v727 = vpow.pop %v726
  %v728 = vmul.f32 %v711, 1.442695
  %v729 = vpow.pop %v728
  %v730 = vmul.f32 %v712, 1.442695
  %v731 = vpow.pop %v730
  %v732 = vmul.f32 %v713, 1.442695
  %v733 = vpow.pop %v732
  %v734 = vmul.f32 %v714, 1.442695
  %v735 = vpow.pop %v734
  %v736 = vmul.f32 %v715, 1.442695
  %v737 = vpow.pop %v736
  %v738 = vmul.f32 %v716, 1.442695
  %v739 = vpow.pop %v738
  %v740 = vmul.f32 %v717, 1.442695
  %v741 = vpow.pop %v740
  %v742 = vmul.f32 %v718, 1.442695
  %v743 = vpow.pop %v742
  %v744 = vmul.f32 %v719, 1.442695
  %v745 = vpow.pop %v744
  %v746 = vmul.f32 %v720, 1.442695
  %v747 = vpow.pop %v746
  %v748 = vmul.f32 %v721, 1.442695
  %v749 = vpow.pop %v748
  %v750 = vmul.f32 %v722, 1.442695
  %v751 = vpow.pop %v750
  %v752 = vmul.f32 %v723, 1.442695
  %v753 = vpow.pop %v752
  %v754 = vmul.f32 %v724, 1.442695
  %v755 = vpow.pop %v754
  %v756 = vmul.f32 %v725, 1.442695
  %v757 = vpow.pop %v756
  %v758 = vmax.f32 %v22, 0.0
  %v759 = vmax.f32 %v23, 0.0
  %v760 = vmax.f32 %v24, 0.0
  %v761 = vmax.f32 %v25, 0.0
  %v762 = vmax.f32 %v26, 0.0
  %v763 = vmax.f32 %v27, 0.0
  %v764 = vmax.f32 %v28, 0.0
  %v765 = vmax.f32 %v29, 0.0
  %v766 = vmax.f32 %v30, 0.0
  %v767 = vmax.f32 %v31, 0.0
  %v768 = vmax.f32 %v32, 0.0
  %v769 = vmax.f32 %v33, 0.0
  %v770 = vmax.f32 %v34, 0.0
  %v771 = vmax.f32 %v35, 0.0
  %v772 = vmax.f32 %v36, 0.0
  %v773 = vmax.f32 %v37, 0.0
  %v774 = vmul.f32 %v22, %v38
  %v775 = vmul.f32 %v23, %v39
  %v776 = vmul.f32 %v24, %v40
  %v777 = vmul.f32 %v25, %v41
  %v778 = vmul.f32 %v26, %v42
  %v779 = vmul.f32 %v27, %v43
  %v780 = vmul.f32 %v28, %v44
  %v781 = vmul.f32 %v29, %v45
  %v782 = vmul.f32 %v30, %v46
  %v783 = vmul.f32 %v31, %v47
  %v784 = vmul.f32 %v32, %v48
  %v785 = vmul.f32 %v33, %v49
  %v786 = vmul.f32 %v34, %v50
  %v787 = vmul.f32 %v35, %v51
  %v788 = vmul.f32 %v36, %v52
  %v789 = vmul.f32 %v37, %v53
  %v790 = vsub.f32 %v758, %v774
  %v791 = vsub.f32 %v759, %v775
  %v792 = vsub.f32 %v760, %v776
  %v793 = vsub.f32 %v761, %v777
  %v794 = vsub.f32 %v762, %v778
  %v795 = vsub.f32 %v763, %v779
  %v796 = vsub.f32 %v764, %v780
  %v797 = vsub.f32 %v765, %v781
  %v798 = vsub.f32 %v766, %v782
  %v799 = vsub.f32 %v767, %v783
  %v800 = vsub.f32 %v768, %v784
  %v801 = vsub.f32 %v769, %v785
  %v802 = vsub.f32 %v770, %v786
  %v803 = vsub.f32 %v771, %v787
  %v804 = vsub.f32 %v772, %v788
  %v805 = vsub.f32 %v773, %v789
  %v806 = vadd.f32 %v727, 1.0
  %v807 = vadd.f32 %v729, 1.0
  %v808 = vadd.f32 %v731, 1.0
  %v809 = vadd.f32 %v733, 1.0
  %v810 = vadd.f32 %v735, 1.0
  %v811 = vadd.f32 %v737, 1.0
  %v812 = vadd.f32 %v739, 1.0
  %v813 = vadd.f32 %v741, 1.0
  %v814 = vadd.f32 %v743, 1.0
  %v815 = vadd.f32 %v745, 1.0
  %v816 = vadd.f32 %v747, 1.0
  %v817 = vadd.f32 %v749, 1.0
  %v818 = vadd.f32 %v751, 1.0
  %v819 = vadd.f32 %v753, 1.0
  %v820 = vadd.f32 %v755, 1.0
  %v821 = vadd.f32 %v757, 1.0
  %v822 = vlog2.pop %v806
  %v823 = vmul.f32 %v822, 0.6931472
  %v824 = vlog2.pop %v807
  %v825 = vmul.f32 %v824, 0.6931472
  %v826 = vlog2.pop %v808
  %v827 = vmul.f32 %v826, 0.6931472
  %v828 = vlog2.pop %v809
  %v829 = vmul.f32 %v828, 0.6931472
  %v830 = vlog2.pop %v810
  %v831 = vmul.f32 %v830, 0.6931472
  %v832 = vlog2.pop %v811
  %v833 = vmul.f32 %v832, 0.6931472
  %v834 = vlog2.pop %v812
  %v835 = vmul.f32 %v834, 0.6931472
  %v836 = vlog2.pop %v813
  %v837 = vmul.f32 %v836, 0.6931472
  %v838 = vlog2.pop %v814
  %v839 = vmul.f32 %v838, 0.6931472
  %v840 = vlog2.pop %v815
  %v841 = vmul.f32 %v840, 0.6931472
  %v842 = vlog2.pop %v816
  %v843 = vmul.f32 %v842, 0.6931472
  %v844 = vlog2.pop %v817
  %v845 = vmul.f32 %v844, 0.6931472
  %v846 = vlog2.pop %v818
  %v847 = vmul.f32 %v846, 0.6931472
  %v848 = vlog2.pop %v819
  %v849 = vmul.f32 %v848, 0.6931472
  %v850 = vlog2.pop %v820
  %v851 = vmul.f32 %v850, 0.6931472
  %v852 = vlog2.pop %v821
  %v853 = vmul.f32 %v852, 0.6931472
  %v854 = vadd.f32 %v790, %v823
  %v855 = vadd.f32 %v791, %v825
  %v856 = vadd.f32 %v792, %v827
  %v857 = vadd.f32 %v793, %v829
  %v858 = vadd.f32 %v794, %v831
  %v859 = vadd.f32 %v795, %v833
  %v860 = vadd.f32 %v796, %v835
  %v861 = vadd.f32 %v797, %v837
  %v862 = vadd.f32 %v798, %v839
  %v863 = vadd.f32 %v799, %v841
  %v864 = vadd.f32 %v800, %v843
  %v865 = vadd.f32 %v801, %v845
  %v866 = vadd.f32 %v802, %v847
  %v867 = vadd.f32 %v803, %v849
  %v868 = vadd.f32 %v804, %v851
  %v869 = vadd.f32 %v805, %v853
  %v870 = vrcp.pop %v806
  %v871 = vmul.f32 1.0, %v870
  %v872 = vrcp.pop %v807
  %v873 = vmul.f32 1.0, %v872
  %v874 = vrcp.pop %v808
  %v875 = vmul.f32 1.0, %v874
  %v876 = vrcp.pop %v809
  %v877 = vmul.f32 1.0, %v876
  %v878 = vrcp.pop %v810
  %v879 = vmul.f32 1.0, %v878
  %v880 = vrcp.pop %v811
  %v881 = vmul.f32 1.0, %v880
  %v882 = vrcp.pop %v812
  %v883 = vmul.f32 1.0, %v882
  %v884 = vrcp.pop %v813
  %v885 = vmul.f32 1.0, %v884
  %v886 = vrcp.pop %v814
  %v887 = vmul.f32 1.0, %v886
  %v888 = vrcp.pop %v815
  %v889 = vmul.f32 1.0, %v888
  %v890 = vrcp.pop %v816
  %v891 = vmul.f32 1.0, %v890
  %v892 = vrcp.pop %v817
  %v893 = vmul.f32 1.0, %v892
  %v894 = vrcp.pop %v818
  %v895 = vmul.f32 1.0, %v894
  %v896 = vrcp.pop %v819
  %v897 = vmul.f32 1.0, %v896
  %v898 = vrcp.pop %v820
  %v899 = vmul.f32 1.0, %v898
  %v900 = vrcp.pop %v821
  %v901 = vmul.f32 1.0, %v900
  %vm902 = vcmp.ge.f32.partialorder %v22, 0.0
  %vm903 = vcmp.ge.f32.partialorder %v23, 0.0
  %vm904 = vcmp.ge.f32.partialorder %v24, 0.0
  %vm905 = vcmp.ge.f32.partialorder %v25, 0.0
  %vm906 = vcmp.ge.f32.partialorder %v26, 0.0
  %vm907 = vcmp.ge.f32.partialorder %v27, 0.0
  %vm908 = vcmp.ge.f32.partialorder %v28, 0.0
  %vm909 = vcmp.ge.f32.partialorder %v29, 0.0
  %vm910 = vcmp.ge.f32.partialorder %v30, 0.0
  %vm911 = vcmp.ge.f32.partialorder %v31, 0.0
  %vm912 = vcmp.ge.f32.partialorder %v32, 0.0
  %vm913 = vcmp.ge.f32.partialorder %v33, 0.0
  %vm914 = vcmp.ge.f32.partialorder %v34, 0.0
  %vm915 = vcmp.ge.f32.partialorder %v35, 0.0
  %vm916 = vcmp.ge.f32.partialorder %v36, 0.0
  %vm917 = vcmp.ge.f32.partialorder %v37, 0.0
  %v918 = vmul.f32 %v727, %v871
  %v919 = vmul.f32 %v729, %v873
  %v920 = vmul.f32 %v731, %v875
  %v921 = vmul.f32 %v733, %v877
  %v922 = vmul.f32 %v735, %v879
  %v923 = vmul.f32 %v737, %v881
  %v924 = vmul.f32 %v739, %v883
  %v925 = vmul.f32 %v741, %v885
  %v926 = vmul.f32 %v743, %v887
  %v927 = vmul.f32 %v745, %v889
  %v928 = vmul.f32 %v747, %v891
  %v929 = vmul.f32 %v749, %v893
  %v930 = vmul.f32 %v751, %v895
  %v931 = vmul.f32 %v753, %v897
  %v932 = vmul.f32 %v755, %v899
  %v933 = vmul.f32 %v757, %v901
  %v934 = vsel %vm902, %v871, %v918
  %v935 = vsel %vm903, %v873, %v919
  %v936 = vsel %vm904, %v875, %v920
  %v937 = vsel %vm905, %v877, %v921
  %v938 = vsel %vm906, %v879, %v922
  %v939 = vsel %vm907, %v881, %v923
  %v940 = vsel %vm908, %v883, %v924
  %v941 = vsel %vm909, %v885, %v925
  %v942 = vsel %vm910, %v887, %v926
  %v943 = vsel %vm911, %v889, %v927
  %v944 = vsel %vm912, %v891, %v928
  %v945 = vsel %vm913, %v893, %v929
  %v946 = vsel %vm914, %v895, %v930
  %v947 = vsel %vm915, %v897, %v931
  %v948 = vsel %vm916, %v899, %v932
  %v949 = vsel %vm917, %v901, %v933
  %v950 = vmul.f32 %v934, %v38
  %v951 = vmul.f32 %v935, %v39
  %v952 = vmul.f32 %v936, %v40
  %v953 = vmul.f32 %v937, %v41
  %v954 = vmul.f32 %v938, %v42
  %v955 = vmul.f32 %v939, %v43
  %v956 = vmul.f32 %v940, %v44
  %v957 = vmul.f32 %v941, %v45
  %v958 = vmul.f32 %v942, %v46
  %v959 = vmul.f32 %v943, %v47
  %v960 = vmul.f32 %v944, %v48
  %v961 = vmul.f32 %v945, %v49
  %v962 = vmul.f32 %v946, %v50
  %v963 = vmul.f32 %v947, %v51
  %v964 = vmul.f32 %v948, %v52
  %v965 = vmul.f32 %v949, %v53
  %v966 = vmul.f32 %v950, %v678
  %v967 = vmul.f32 %v951, %v679
  %v968 = vmul.f32 %v952, %v680
  %v969 = vmul.f32 %v953, %v681
  %v970 = vmul.f32 %v954, %v682
  %v971 = vmul.f32 %v955, %v683
  %v972 = vmul.f32 %v956, %v684
  %v973 = vmul.f32 %v957, %v685
  %v974 = vmul.f32 %v958, %v686
  %v975 = vmul.f32 %v959, %v687
  %v976 = vmul.f32 %v960, %v688
  %v977 = vmul.f32 %v961, %v689
  %v978 = vmul.f32 %v962, %v690
  %v979 = vmul.f32 %v963, %v691
  %v980 = vmul.f32 %v964, %v692
  %v981 = vmul.f32 %v965, %v693
  %v982 = vadd.f32 %v934, %v38
  %v983 = vadd.f32 %v935, %v39
  %v984 = vadd.f32 %v936, %v40
  %v985 = vadd.f32 %v937, %v41
  %v986 = vadd.f32 %v938, %v42
  %v987 = vadd.f32 %v939, %v43
  %v988 = vadd.f32 %v940, %v44
  %v989 = vadd.f32 %v941, %v45
  %v990 = vadd.f32 %v942, %v46
  %v991 = vadd.f32 %v943, %v47
  %v992 = vadd.f32 %v944, %v48
  %v993 = vadd.f32 %v945, %v49
  %v994 = vadd.f32 %v946, %v50
  %v995 = vadd.f32 %v947, %v51
  %v996 = vadd.f32 %v948, %v52
  %v997 = vadd.f32 %v949, %v53
  %v998 = vmul.f32 %v982, %v678
  %v999 = vmul.f32 %v983, %v679
  %v1000 = vmul.f32 %v984, %v680
  %v1001 = vmul.f32 %v985, %v681
  %v1002 = vmul.f32 %v986, %v682
  %v1003 = vmul.f32 %v987, %v683
  %v1004 = vmul.f32 %v988, %v684
  %v1005 = vmul.f32 %v989, %v685
  %v1006 = vmul.f32 %v990, %v686
  %v1007 = vmul.f32 %v991, %v687
  %v1008 = vmul.f32 %v992, %v688
  %v1009 = vmul.f32 %v993, %v689
  %v1010 = vmul.f32 %v994, %v690
  %v1011 = vmul.f32 %v995, %v691
  %v1012 = vmul.f32 %v996, %v692
  %v1013 = vmul.f32 %v997, %v693
  %v1014 = vsel %vm97, %v854, 0.0
  %1015 = vadd.xlane.f32.xlu0 %v1014
  %v1016 = vpop.xlane.xlu0 %1015
  %v1017 = vsel %vm97, %v855, 0.0
  %1018 = vadd.xlane.f32.xlu0 %v1017
  %v1019 = vpop.xlane.xlu0 %1018
  %v1020 = vsel %vm97, %v856, 0.0
  %1021 = vadd.xlane.f32.xlu0 %v1020
  %v1022 = vpop.xlane.xlu0 %1021
  %v1023 = vsel %vm97, %v857, 0.0
  %1024 = vadd.xlane.f32.xlu0 %v1023
  %v1025 = vpop.xlane.xlu0 %1024
  %v1026 = vsel %vm97, %v858, 0.0
  %1027 = vadd.xlane.f32.xlu0 %v1026
  %v1028 = vpop.xlane.xlu0 %1027
  %v1029 = vsel %vm97, %v859, 0.0
  %1030 = vadd.xlane.f32.xlu0 %v1029
  %v1031 = vpop.xlane.xlu0 %1030
  %v1032 = vsel %vm97, %v860, 0.0
  %1033 = vadd.xlane.f32.xlu0 %v1032
  %v1034 = vpop.xlane.xlu0 %1033
  %v1035 = vsel %vm97, %v861, 0.0
  %1036 = vadd.xlane.f32.xlu0 %v1035
  %v1037 = vpop.xlane.xlu0 %1036
  %v1038 = vsel %vm97, %v862, 0.0
  %1039 = vadd.xlane.f32.xlu0 %v1038
  %v1040 = vpop.xlane.xlu0 %1039
  %v1041 = vsel %vm97, %v863, 0.0
  %1042 = vadd.xlane.f32.xlu0 %v1041
  %v1043 = vpop.xlane.xlu0 %1042
  %v1044 = vsel %vm97, %v864, 0.0
  %1045 = vadd.xlane.f32.xlu0 %v1044
  %v1046 = vpop.xlane.xlu0 %1045
  %v1047 = vsel %vm97, %v865, 0.0
  %1048 = vadd.xlane.f32.xlu0 %v1047
  %v1049 = vpop.xlane.xlu0 %1048
  %v1050 = vsel %vm97, %v866, 0.0
  %1051 = vadd.xlane.f32.xlu0 %v1050
  %v1052 = vpop.xlane.xlu0 %1051
  %v1053 = vsel %vm97, %v867, 0.0
  %1054 = vadd.xlane.f32.xlu0 %v1053
  %v1055 = vpop.xlane.xlu0 %1054
  %v1056 = vsel %vm97, %v868, 0.0
  %1057 = vadd.xlane.f32.xlu0 %v1056
  %v1058 = vpop.xlane.xlu0 %1057
  %v1059 = vsel %vm97, %v869, 0.0
  %1060 = vadd.xlane.f32.xlu0 %v1059
  %v1061 = vpop.xlane.xlu0 %1060
  %v1078 = vlaneseq
  %v1079 = vshrl.u32 %v1078, 7
  %v1080 = vsub.s32 %v75, %v1079
  %v1081 = vrot.slane %v1016, %v1080
  %v1082 = vadd.s32 %v75, 4294967288
  %v1083 = vlaneseq
  %v1084 = vshrl.u32 %v1083, 7
  %v1085 = vsub.s32 %v1082, %v1084
  %v1086 = vrot.slane %v1019, %v1085
  %vm1087 = vcmask 130112
  %v1088 = vsel %vm1087, %v1086, %v1081
  %v1089 = vlaneseq
  %v1090 = vshrl.u32 %v1089, 7
  %v1091 = vsub.s32 %v75, %v1090
  %v1092 = vrot.slane %v1022, %v1091
  %v1093 = vlaneseq
  %v1094 = vshrl.u32 %v1093, 7
  %v1095 = vsub.s32 %v1082, %v1094
  %v1096 = vrot.slane %v1025, %v1095
  %v1097 = vsel %vm1087, %v1096, %v1092
  %v1098 = vlaneseq
  %v1099 = vshrl.u32 %v1098, 7
  %v1100 = vsub.s32 %v75, %v1099
  %v1101 = vrot.slane %v1028, %v1100
  %v1102 = vlaneseq
  %v1103 = vshrl.u32 %v1102, 7
  %v1104 = vsub.s32 %v1082, %v1103
  %v1105 = vrot.slane %v1031, %v1104
  %v1106 = vsel %vm1087, %v1105, %v1101
  %v1107 = vlaneseq
  %v1108 = vshrl.u32 %v1107, 7
  %v1109 = vsub.s32 %v75, %v1108
  %v1110 = vrot.slane %v1034, %v1109
  %v1111 = vlaneseq
  %v1112 = vshrl.u32 %v1111, 7
  %v1113 = vsub.s32 %v1082, %v1112
  %v1114 = vrot.slane %v1037, %v1113
  %v1115 = vsel %vm1087, %v1114, %v1110
  %v1116 = vlaneseq
  %v1117 = vshrl.u32 %v1116, 7
  %v1118 = vsub.s32 %v75, %v1117
  %v1119 = vrot.slane %v1040, %v1118
  %v1120 = vlaneseq
  %v1121 = vshrl.u32 %v1120, 7
  %v1122 = vsub.s32 %v1082, %v1121
  %v1123 = vrot.slane %v1043, %v1122
  %v1124 = vsel %vm1087, %v1123, %v1119
  %v1125 = vlaneseq
  %v1126 = vshrl.u32 %v1125, 7
  %v1127 = vsub.s32 %v75, %v1126
  %v1128 = vrot.slane %v1046, %v1127
  %v1129 = vlaneseq
  %v1130 = vshrl.u32 %v1129, 7
  %v1131 = vsub.s32 %v1082, %v1130
  %v1132 = vrot.slane %v1049, %v1131
  %v1133 = vsel %vm1087, %v1132, %v1128
  %v1134 = vlaneseq
  %v1135 = vshrl.u32 %v1134, 7
  %v1136 = vsub.s32 %v75, %v1135
  %v1137 = vrot.slane %v1052, %v1136
  %v1138 = vlaneseq
  %v1139 = vshrl.u32 %v1138, 7
  %v1140 = vsub.s32 %v1082, %v1139
  %v1141 = vrot.slane %v1055, %v1140
  %v1142 = vsel %vm1087, %v1141, %v1137
  %v1143 = vlaneseq
  %v1144 = vshrl.u32 %v1143, 7
  %v1145 = vsub.s32 %v75, %v1144
  %v1146 = vrot.slane %v1058, %v1145
  %v1147 = vlaneseq
  %v1148 = vshrl.u32 %v1147, 7
  %v1149 = vsub.s32 %v1082, %v1148
  %v1150 = vrot.slane %v1061, %v1149
  %v1151 = vsel %vm1087, %v1150, %v1146
  %vm1152 = vcmask 1041409
  %v1153 = vsel %vm1152, %v1097, %v1088
  %vm1154 = vcmask 1042434
  %v1155 = vsel %vm1154, %v1106, %v1153
  %vm1156 = vcmask 1043459
  %v1157 = vsel %vm1156, %v1115, %v1155
  %vm1158 = vcmask 1044484
  %v1159 = vsel %vm1158, %v1124, %v1157
  %vm1160 = vcmask 1045509
  %v1161 = vsel %vm1160, %v1133, %v1159
  %vm1162 = vcmask 1046534
  %v1163 = vsel %vm1162, %v1142, %v1161
  %vm1164 = vcmask 1047559
  %v1165 = vsel %vm1164, %v1151, %v1163
  %v1167 = vsel %vm97, %v1165, 0.0
  %1168 = vadd.xlane.f32.xlu0 %v1167
  %v1169 = vpop.xlane.xlu0 %1168
  %1170 = vst [vmem:[%s4] sm:$0xff] %v1169
  %v1171 = vsel %vm97, %v966, 0.0
  %1172 = vadd.xlane.f32.xlu0 %v1171
  %v1173 = vpop.xlane.xlu0 %1172
  %v1174 = vsel %vm97, %v967, 0.0
  %1175 = vadd.xlane.f32.xlu0 %v1174
  %v1176 = vpop.xlane.xlu0 %1175
  %v1177 = vsel %vm97, %v968, 0.0
  %1178 = vadd.xlane.f32.xlu0 %v1177
  %v1179 = vpop.xlane.xlu0 %1178
  %v1180 = vsel %vm97, %v969, 0.0
  %1181 = vadd.xlane.f32.xlu0 %v1180
  %v1182 = vpop.xlane.xlu0 %1181
  %v1183 = vsel %vm97, %v970, 0.0
  %1184 = vadd.xlane.f32.xlu0 %v1183
  %v1185 = vpop.xlane.xlu0 %1184
  %v1186 = vsel %vm97, %v971, 0.0
  %1187 = vadd.xlane.f32.xlu0 %v1186
  %v1188 = vpop.xlane.xlu0 %1187
  %v1189 = vsel %vm97, %v972, 0.0
  %1190 = vadd.xlane.f32.xlu0 %v1189
  %v1191 = vpop.xlane.xlu0 %1190
  %v1192 = vsel %vm97, %v973, 0.0
  %1193 = vadd.xlane.f32.xlu0 %v1192
  %v1194 = vpop.xlane.xlu0 %1193
  %v1195 = vsel %vm97, %v974, 0.0
  %1196 = vadd.xlane.f32.xlu0 %v1195
  %v1197 = vpop.xlane.xlu0 %1196
  %v1198 = vsel %vm97, %v975, 0.0
  %1199 = vadd.xlane.f32.xlu0 %v1198
  %v1200 = vpop.xlane.xlu0 %1199
  %v1201 = vsel %vm97, %v976, 0.0
  %1202 = vadd.xlane.f32.xlu0 %v1201
  %v1203 = vpop.xlane.xlu0 %1202
  %v1204 = vsel %vm97, %v977, 0.0
  %1205 = vadd.xlane.f32.xlu0 %v1204
  %v1206 = vpop.xlane.xlu0 %1205
  %v1207 = vsel %vm97, %v978, 0.0
  %1208 = vadd.xlane.f32.xlu0 %v1207
  %v1209 = vpop.xlane.xlu0 %1208
  %v1210 = vsel %vm97, %v979, 0.0
  %1211 = vadd.xlane.f32.xlu0 %v1210
  %v1212 = vpop.xlane.xlu0 %1211
  %v1213 = vsel %vm97, %v980, 0.0
  %1214 = vadd.xlane.f32.xlu0 %v1213
  %v1215 = vpop.xlane.xlu0 %1214
  %v1216 = vsel %vm97, %v981, 0.0
  %1217 = vadd.xlane.f32.xlu0 %v1216
  %v1218 = vpop.xlane.xlu0 %1217
  %v1235 = vlaneseq
  %v1236 = vshrl.u32 %v1235, 7
  %v1237 = vsub.s32 %v75, %v1236
  %v1238 = vrot.slane %v1173, %v1237
  %v1239 = vlaneseq
  %v1240 = vshrl.u32 %v1239, 7
  %v1241 = vsub.s32 %v1082, %v1240
  %v1242 = vrot.slane %v1176, %v1241
  %v1243 = vsel %vm1087, %v1242, %v1238
  %v1244 = vlaneseq
  %v1245 = vshrl.u32 %v1244, 7
  %v1246 = vsub.s32 %v75, %v1245
  %v1247 = vrot.slane %v1179, %v1246
  %v1248 = vlaneseq
  %v1249 = vshrl.u32 %v1248, 7
  %v1250 = vsub.s32 %v1082, %v1249
  %v1251 = vrot.slane %v1182, %v1250
  %v1252 = vsel %vm1087, %v1251, %v1247
  %v1253 = vlaneseq
  %v1254 = vshrl.u32 %v1253, 7
  %v1255 = vsub.s32 %v75, %v1254
  %v1256 = vrot.slane %v1185, %v1255
  %v1257 = vlaneseq
  %v1258 = vshrl.u32 %v1257, 7
  %v1259 = vsub.s32 %v1082, %v1258
  %v1260 = vrot.slane %v1188, %v1259
  %v1261 = vsel %vm1087, %v1260, %v1256
  %v1262 = vlaneseq
  %v1263 = vshrl.u32 %v1262, 7
  %v1264 = vsub.s32 %v75, %v1263
  %v1265 = vrot.slane %v1191, %v1264
  %v1266 = vlaneseq
  %v1267 = vshrl.u32 %v1266, 7
  %v1268 = vsub.s32 %v1082, %v1267
  %v1269 = vrot.slane %v1194, %v1268
  %v1270 = vsel %vm1087, %v1269, %v1265
  %v1271 = vlaneseq
  %v1272 = vshrl.u32 %v1271, 7
  %v1273 = vsub.s32 %v75, %v1272
  %v1274 = vrot.slane %v1197, %v1273
  %v1275 = vlaneseq
  %v1276 = vshrl.u32 %v1275, 7
  %v1277 = vsub.s32 %v1082, %v1276
  %v1278 = vrot.slane %v1200, %v1277
  %v1279 = vsel %vm1087, %v1278, %v1274
  %v1280 = vlaneseq
  %v1281 = vshrl.u32 %v1280, 7
  %v1282 = vsub.s32 %v75, %v1281
  %v1283 = vrot.slane %v1203, %v1282
  %v1284 = vlaneseq
  %v1285 = vshrl.u32 %v1284, 7
  %v1286 = vsub.s32 %v1082, %v1285
  %v1287 = vrot.slane %v1206, %v1286
  %v1288 = vsel %vm1087, %v1287, %v1283
  %v1289 = vlaneseq
  %v1290 = vshrl.u32 %v1289, 7
  %v1291 = vsub.s32 %v75, %v1290
  %v1292 = vrot.slane %v1209, %v1291
  %v1293 = vlaneseq
  %v1294 = vshrl.u32 %v1293, 7
  %v1295 = vsub.s32 %v1082, %v1294
  %v1296 = vrot.slane %v1212, %v1295
  %v1297 = vsel %vm1087, %v1296, %v1292
  %v1298 = vlaneseq
  %v1299 = vshrl.u32 %v1298, 7
  %v1300 = vsub.s32 %v75, %v1299
  %v1301 = vrot.slane %v1215, %v1300
  %v1302 = vlaneseq
  %v1303 = vshrl.u32 %v1302, 7
  %v1304 = vsub.s32 %v1082, %v1303
  %v1305 = vrot.slane %v1218, %v1304
  %v1306 = vsel %vm1087, %v1305, %v1301
  %v1307 = vsel %vm1152, %v1252, %v1243
  %v1308 = vsel %vm1154, %v1261, %v1307
  %v1309 = vsel %vm1156, %v1270, %v1308
  %v1310 = vsel %vm1158, %v1279, %v1309
  %v1311 = vsel %vm1160, %v1288, %v1310
  %v1312 = vsel %vm1162, %v1297, %v1311
  %v1313 = vsel %vm1164, %v1306, %v1312
  %v1315 = vsel %vm97, %v1313, 0.0
  %1316 = vadd.xlane.f32.xlu0 %v1315
  %v1317 = vpop.xlane.xlu0 %1316
  %1318 = vst [vmem:[%s5] sm:$0xff] %v1317
  %v1319 = vsel %vm97, %v998, 0.0
  %1320 = vadd.xlane.f32.xlu0 %v1319
  %v1321 = vpop.xlane.xlu0 %1320
  %v1322 = vsel %vm97, %v999, 0.0
  %1323 = vadd.xlane.f32.xlu0 %v1322
  %v1324 = vpop.xlane.xlu0 %1323
  %v1325 = vsel %vm97, %v1000, 0.0
  %1326 = vadd.xlane.f32.xlu0 %v1325
  %v1327 = vpop.xlane.xlu0 %1326
  %v1328 = vsel %vm97, %v1001, 0.0
  %1329 = vadd.xlane.f32.xlu0 %v1328
  %v1330 = vpop.xlane.xlu0 %1329
  %v1331 = vsel %vm97, %v1002, 0.0
  %1332 = vadd.xlane.f32.xlu0 %v1331
  %v1333 = vpop.xlane.xlu0 %1332
  %v1334 = vsel %vm97, %v1003, 0.0
  %1335 = vadd.xlane.f32.xlu0 %v1334
  %v1336 = vpop.xlane.xlu0 %1335
  %v1337 = vsel %vm97, %v1004, 0.0
  %1338 = vadd.xlane.f32.xlu0 %v1337
  %v1339 = vpop.xlane.xlu0 %1338
  %v1340 = vsel %vm97, %v1005, 0.0
  %1341 = vadd.xlane.f32.xlu0 %v1340
  %v1342 = vpop.xlane.xlu0 %1341
  %v1343 = vsel %vm97, %v1006, 0.0
  %1344 = vadd.xlane.f32.xlu0 %v1343
  %v1345 = vpop.xlane.xlu0 %1344
  %v1346 = vsel %vm97, %v1007, 0.0
  %1347 = vadd.xlane.f32.xlu0 %v1346
  %v1348 = vpop.xlane.xlu0 %1347
  %v1349 = vsel %vm97, %v1008, 0.0
  %1350 = vadd.xlane.f32.xlu0 %v1349
  %v1351 = vpop.xlane.xlu0 %1350
  %v1352 = vsel %vm97, %v1009, 0.0
  %1353 = vadd.xlane.f32.xlu0 %v1352
  %v1354 = vpop.xlane.xlu0 %1353
  %v1355 = vsel %vm97, %v1010, 0.0
  %1356 = vadd.xlane.f32.xlu0 %v1355
  %v1357 = vpop.xlane.xlu0 %1356
  %v1358 = vsel %vm97, %v1011, 0.0
  %1359 = vadd.xlane.f32.xlu0 %v1358
  %v1360 = vpop.xlane.xlu0 %1359
  %v1361 = vsel %vm97, %v1012, 0.0
  %1362 = vadd.xlane.f32.xlu0 %v1361
  %v1363 = vpop.xlane.xlu0 %1362
  %v1364 = vsel %vm97, %v1013, 0.0
  %1365 = vadd.xlane.f32.xlu0 %v1364
  %v1366 = vpop.xlane.xlu0 %1365
  %v1383 = vlaneseq
  %v1384 = vshrl.u32 %v1383, 7
  %v1385 = vsub.s32 %v75, %v1384
  %v1386 = vrot.slane %v1321, %v1385
  %v1387 = vlaneseq
  %v1388 = vshrl.u32 %v1387, 7
  %v1389 = vsub.s32 %v1082, %v1388
  %v1390 = vrot.slane %v1324, %v1389
  %v1391 = vsel %vm1087, %v1390, %v1386
  %v1392 = vlaneseq
  %v1393 = vshrl.u32 %v1392, 7
  %v1394 = vsub.s32 %v75, %v1393
  %v1395 = vrot.slane %v1327, %v1394
  %v1396 = vlaneseq
  %v1397 = vshrl.u32 %v1396, 7
  %v1398 = vsub.s32 %v1082, %v1397
  %v1399 = vrot.slane %v1330, %v1398
  %v1400 = vsel %vm1087, %v1399, %v1395
  %v1401 = vlaneseq
  %v1402 = vshrl.u32 %v1401, 7
  %v1403 = vsub.s32 %v75, %v1402
  %v1404 = vrot.slane %v1333, %v1403
  %v1405 = vlaneseq
  %v1406 = vshrl.u32 %v1405, 7
  %v1407 = vsub.s32 %v1082, %v1406
  %v1408 = vrot.slane %v1336, %v1407
  %v1409 = vsel %vm1087, %v1408, %v1404
  %v1410 = vlaneseq
  %v1411 = vshrl.u32 %v1410, 7
  %v1412 = vsub.s32 %v75, %v1411
  %v1413 = vrot.slane %v1339, %v1412
  %v1414 = vlaneseq
  %v1415 = vshrl.u32 %v1414, 7
  %v1416 = vsub.s32 %v1082, %v1415
  %v1417 = vrot.slane %v1342, %v1416
  %v1418 = vsel %vm1087, %v1417, %v1413
  %v1419 = vlaneseq
  %v1420 = vshrl.u32 %v1419, 7
  %v1421 = vsub.s32 %v75, %v1420
  %v1422 = vrot.slane %v1345, %v1421
  %v1423 = vlaneseq
  %v1424 = vshrl.u32 %v1423, 7
  %v1425 = vsub.s32 %v1082, %v1424
  %v1426 = vrot.slane %v1348, %v1425
  %v1427 = vsel %vm1087, %v1426, %v1422
  %v1428 = vlaneseq
  %v1429 = vshrl.u32 %v1428, 7
  %v1430 = vsub.s32 %v75, %v1429
  %v1431 = vrot.slane %v1351, %v1430
  %v1432 = vlaneseq
  %v1433 = vshrl.u32 %v1432, 7
  %v1434 = vsub.s32 %v1082, %v1433
  %v1435 = vrot.slane %v1354, %v1434
  %v1436 = vsel %vm1087, %v1435, %v1431
  %v1437 = vlaneseq
  %v1438 = vshrl.u32 %v1437, 7
  %v1439 = vsub.s32 %v75, %v1438
  %v1440 = vrot.slane %v1357, %v1439
  %v1441 = vlaneseq
  %v1442 = vshrl.u32 %v1441, 7
  %v1443 = vsub.s32 %v1082, %v1442
  %v1444 = vrot.slane %v1360, %v1443
  %v1445 = vsel %vm1087, %v1444, %v1440
  %v1446 = vlaneseq
  %v1447 = vshrl.u32 %v1446, 7
  %v1448 = vsub.s32 %v75, %v1447
  %v1449 = vrot.slane %v1363, %v1448
  %v1450 = vlaneseq
  %v1451 = vshrl.u32 %v1450, 7
  %v1452 = vsub.s32 %v1082, %v1451
  %v1453 = vrot.slane %v1366, %v1452
  %v1454 = vsel %vm1087, %v1453, %v1449
  %v1455 = vsel %vm1152, %v1400, %v1391
  %v1456 = vsel %vm1154, %v1409, %v1455
  %v1457 = vsel %vm1156, %v1418, %v1456
  %v1458 = vsel %vm1158, %v1427, %v1457
  %v1459 = vsel %vm1160, %v1436, %v1458
  %v1460 = vsel %vm1162, %v1445, %v1459
  %v1461 = vsel %vm1164, %v1454, %v1460
  %v1463 = vsel %vm97, %v1461, 0.0
  %1464 = vadd.xlane.f32.xlu0 %v1463
  %v1465 = vpop.xlane.xlu0 %1464
  %1466 = vst [vmem:[%s6] sm:$0xff] %v1465
  // Predicated region
  $region18: #{uncertainty_aware_structure_loss.1} parent=0 // pred_check
    _
  $region19: #{uncertainty_aware_structure_loss.1} parent=0 // pred_check_branch
    %1468 = sbr.rel (0) target = $region21
  $region20: #{uncertainty_aware_structure_loss.1} parent=0 // pred_region
    _
  $region21: #{uncertainty_aware_structure_loss.1} parent=0 // pred_fallthru
    _
  // Predicated region
  $region22: #{uncertainty_aware_structure_loss.1} parent=0 // pred_check
    _
  $region23: #{uncertainty_aware_structure_loss.1} parent=0 // pred_check_branch
    %1470 = sbr.rel (0) target = $region25
  $region24: #{uncertainty_aware_structure_loss.1} parent=0 // pred_region
    _
  $region25: #{uncertainty_aware_structure_loss.1} parent=0 // pred_fallthru
    _
  // Predicated region
  $region26: #{uncertainty_aware_structure_loss.1} parent=0 // pred_check
    _
  $region27: #{uncertainty_aware_structure_loss.1} parent=0 // pred_check_branch
    %1472 = sbr.rel (0) target = $region29
  $region28: #{uncertainty_aware_structure_loss.1} parent=0 // pred_region
    _
  $region29: #{uncertainty_aware_structure_loss.1} parent=0 // pred_fallthru
    _
  // Predicated region
  $region30: #{uncertainty_aware_structure_loss.1} parent=0 // pred_check
    _
  $region31: #{uncertainty_aware_structure_loss.1} parent=0 // pred_check_branch
    %1474 = sbr.rel (0) target = $region33
  $region32: #{uncertainty_aware_structure_loss.1} parent=0 // pred_region
    _
  $region33: #{uncertainty_aware_structure_loss.1} parent=0 // pred_fallthru
    _
  // Predicated region
  $region34: #{uncertainty_aware_structure_loss.1} parent=0 // pred_check
    _
  $region35: #{uncertainty_aware_structure_loss.1} parent=0 // pred_check_branch
    %1476 = sbr.rel (0) target = $region37
  $region36: #{uncertainty_aware_structure_loss.1} parent=0 // pred_region
    _
  $region37: #{uncertainty_aware_structure_loss.1} parent=0 // pred_fallthru
    _
  // Predicated region
  $region38: #{uncertainty_aware_structure_loss.1} parent=0 // pred_check
    _
  $region39: #{uncertainty_aware_structure_loss.1} parent=0 // pred_check_branch
    %1478 = sbr.rel (0) target = $region41
  $region40: #{uncertainty_aware_structure_loss.1} parent=0 // pred_region
    _
  $region41: #{uncertainty_aware_structure_loss.1} parent=0 // pred_fallthru
    _

</llo_original>
